<compile_context>
chip_gen: v5e
topology: v5e:2x2
jax: 0.10.0
libtpu: 0.0.40
codegen_flags: <defaults>
</compile_context>

<pallas_src>
import numpy as np
import jax
import jax.numpy as jnp
from jax.experimental import pallas as pl
from jax.experimental.pallas import tpu as pltpu


def influence_kernel(x_ref, wbd_ref, bbd_ref, mdx_ref, mdy_ref, mveh_ref,
                     g_ref, e_ref, wagg_ref, bagg_ref, o_ref):
    # x: (TBF, FOLD*A*D) lane-dense; FOLD batch rows folded into each sublane
    # row.  Cast to f32 on the VMEM tile (PyTorch does .to(float32)).
    x = x_ref[...].astype(jnp.float32)

    # Per-(fold-group, agent) scalars via constant selector matmuls: K is the
    # full lane-dense 512, N is tiny; negligible MXU cost and no relayouts.
    dx = jnp.dot(x, mdx_ref[...], preferred_element_type=jnp.float32)    # (TBF, FOLD*A)
    dy = jnp.dot(x, mdy_ref[...], preferred_element_type=jnp.float32)
    veh = jnp.dot(x, mveh_ref[...], preferred_element_type=jnp.float32)

    dist = jnp.sqrt(dx * dx + dy * dy)
    w = pl.reciprocal(dist + 1.0, approx=True)          # EUP
    w = w * jnp.where(veh == 1.0, 5.0, 1.0)             # vehicle x5; ped/barrier x1 are no-ops

    # Per-group sum over agents (ego rows of G are zero -> excluded), then
    # exact normalization (cheap: once per (TBF, FOLD*A) tile).
    w_sum = jnp.dot(w, g_ref[...], preferred_element_type=jnp.float32)
    w = w / (w_sum + 1e-10)

    # Expand weights into the embedding lane layout; ego rows of E are zero so
    # the ego embedding is dropped by weighting instead of slicing.
    w_exp = jnp.dot(w, e_ref[...], preferred_element_type=jnp.float32)   # (TBF, FOLD*A*H)

    # relu(fc(x)) for all FOLD*A agents at once via the block-diagonal weight:
    # K=FOLD*A*D, N=FOLD*A*H (native MXU shape on v6e/v7x).
    emb = jnp.dot(x, wbd_ref[...], preferred_element_type=jnp.float32) + bbd_ref[...]
    emb = jnp.maximum(emb, 0.0)

    # Weighted agent aggregation + fc_aggregate fused in one matmul; the relu
    # between them is the identity on the nonnegative aggregate.
    out = jnp.dot(emb * w_exp, wagg_ref[...],
                  preferred_element_type=jnp.float32) + bagg_ref[...]    # (TBF, FOLD*H)
    o_ref[...] = out.astype(o_ref.dtype)                                  # lane-dense store


def _build_constants(fc_w, fc_b, agg_w, agg_b, A, fold):
    """Derived weight / selector matrices for the folded lane-dense layout."""
    D, H = fc_w.shape
    fc_w = fc_w.astype(jnp.float32)
    agg_w = agg_w.astype(jnp.float32)

    # Block-diagonal fc weight and tiled biases.
    w_bd = jnp.kron(jnp.eye(fold * A, dtype=jnp.float32), fc_w)            # (fold*A*D, fold*A*H)
    b_bd = jnp.tile(fc_b.reshape(1, H).astype(jnp.float32), (1, fold * A))  # (1, fold*A*H)
    # Fused agent-sum + fc_aggregate weight (block per fold group).
    w_agg = jnp.kron(jnp.kron(jnp.eye(fold, dtype=jnp.float32),
                              jnp.ones((A, 1), jnp.float32)), agg_w)       # (fold*A*H, fold*H)
    b_agg = jnp.tile(agg_b.reshape(1, H).astype(jnp.float32), (1, fold))   # (1, fold*H)

    # Static selector matrices (ego column a=0 left at zero).
    mdx = np.zeros((fold * A * D, fold * A), np.float32)
    mdy = np.zeros((fold * A * D, fold * A), np.float32)
    mveh = np.zeros((fold * A * D, fold * A), np.float32)
    for g in range(fold):
        for a in range(1, A):
            c = g * A + a
            mdx[g * A * D + a * D + 0, c] = 1.0
            mdx[g * A * D + 0 * D + 0, c] = -1.0
            mdy[g * A * D + a * D + 1, c] = 1.0
            mdy[g * A * D + 0 * D + 1, c] = -1.0
            mveh[g * A * D + a * D + 6, c] = 1.0

    valid = (np.arange(A) > 0).astype(np.float32)        # zero for the ego row
    g_mat = np.kron(np.eye(fold, dtype=np.float32),
                    np.outer(valid, np.ones(A, np.float32)))               # (fold*A, fold*A)
    e_mat = np.kron(np.kron(np.eye(fold, dtype=np.float32), np.diag(valid)),
                    np.ones((1, H), np.float32))                           # (fold*A, fold*A*H)

    return (w_bd, b_bd, jnp.asarray(mdx), jnp.asarray(mdy), jnp.asarray(mveh),
            jnp.asarray(g_mat), jnp.asarray(e_mat), w_agg, b_agg)


def influence_encoder(agent_tensor, fc_w, fc_b, agg_w, agg_b, *, fold=4, max_tbf=256):
    B, A, D = agent_tensor.shape
    H = fc_w.shape[1]

    # Pad the batch to a multiple of `fold`; zero rows are numerically benign
    # and their outputs are sliced away below.
    B_pad = ((B + fold - 1) // fold) * fold
    if B_pad != B:
        agent_tensor = jnp.pad(agent_tensor, ((0, B_pad - B), (0, 0), (0, 0)))
    R = B_pad // fold

    # Lane-dense, layout-preserving fold: (B, A, D) -> (R, fold*A*D).
    x_folded = agent_tensor.reshape(R, fold * A * D)

    consts = _build_constants(fc_w, fc_b, agg_w, agg_b, A, fold)

    # Batch tile: large enough to amortize per-step overhead, capped so large
    # batches produce >=4 grid steps (v7x has 2 TensorCores; the parallel grid
    # axis is how they both get work) and VMEM stays modest.  Multiple of 16 so
    # bf16 inputs keep a whole sublane tile.
    if R <= 16:
        tbf = R
    else:
        tbf = max(16, min(max_tbf, (pl.cdiv(R, 4) // 16) * 16))
    grid = (pl.cdiv(R, tbf),)

    FAD, FA, FAH, FH = fold * A * D, fold * A, fold * A * H, fold * H
    const_specs = [
        pl.BlockSpec((FAD, FAH), lambda i: (0, 0)),   # W_bd
        pl.BlockSpec((1, FAH), lambda i: (0, 0)),     # b_bd (tiled)
        pl.BlockSpec((FAD, FA), lambda i: (0, 0)),    # Mdx
        pl.BlockSpec((FAD, FA), lambda i: (0, 0)),    # Mdy
        pl.BlockSpec((FAD, FA), lambda i: (0, 0)),    # Mveh
        pl.BlockSpec((FA, FA), lambda i: (0, 0)),     # G (group sum, ego rows zero)
        pl.BlockSpec((FA, FAH), lambda i: (0, 0)),    # E (weight expansion, ego rows zero)
        pl.BlockSpec((FAH, FH), lambda i: (0, 0)),    # fused agg weight
        pl.BlockSpec((1, FH), lambda i: (0, 0)),      # agg bias (tiled)
    ]

    out_folded = pl.pallas_call(
        influence_kernel,
        out_shape=jax.ShapeDtypeStruct((R, FH), jnp.float32),
        grid_spec=pltpu.PrefetchScalarGridSpec(
            num_scalar_prefetch=0,
            grid=grid,
            in_specs=[pl.BlockSpec((tbf, FAD), lambda i: (i, 0))] + const_specs,
            out_specs=pl.BlockSpec((tbf, FH), lambda i: (i, 0)),
        ),
        compiler_params=pltpu.CompilerParams(
            dimension_semantics=("parallel",),
            vmem_limit_bytes=48 << 20,   # headroom above v5e's 16 MiB default scoped VMEM
        ),
    )(x_folded, *consts)

    # Unfold: (R, fold*H) -> (B, H) (free, contiguous trailing dims).
    return out_folded.reshape(B_pad, H)[:B]


def influence_encoder_ref(x, fc_w, fc_b, agg_w, agg_b):
    """Pure-JAX reference mirroring the PyTorch forward."""
    x = x.astype(jnp.float32)
    agents = x[:, 1:, :]
    ego_pos = x[:, 0:1, 0:2]
    diff = agents[:, :, 0:2] - ego_pos
    dist = jnp.sqrt(jnp.sum(diff * diff, axis=-1, keepdims=True))
    w = 1.0 / (dist + 1.0)
    w = jnp.where(agents[:, :, 6:7] == 1.0, w * 5.0, w)
    w = jnp.where(agents[:, :, 7:8] == 1.0, w * 1.0, w)
    w = jnp.where(agents[:, :, 8:9] == 1.0, w * 1.0, w)
    w = w / (jnp.sum(w, axis=1, keepdims=True) + 1e-10)
    emb = jnp.maximum(jnp.einsum('bad,dh->bah', agents, fc_w) + fc_b, 0.0)
    agg = jnp.sum(emb * w, axis=1)
    return jnp.maximum(agg, 0.0) @ agg_w + agg_b


if __name__ == "__main__":
    def make_inputs(key, B, A, D, dtype):
        k_x, k_cls = jax.random.split(key)
        x = jax.random.normal(k_x, (B, A, D), jnp.float32)
        cls = jax.random.randint(k_cls, (B, A), 0, 3)
        onehot = jax.nn.one_hot(cls, 3, dtype=jnp.float32)   # cols 6/7/8 class flags
        return x.at[:, :, 6:9].set(onehot).astype(dtype)

    A, D, H = 8, 16, 32   # num_agents (ego + 7), input_dim, hidden_dim
    key = jax.random.PRNGKey(0)
    k_p, k_x1, k_x2 = jax.random.split(key, 3)
    k_fw, k_fb, k_aw, k_ab = jax.random.split(k_p, 4)

    fc_w = jax.random.normal(k_fw, (D, H), jnp.float32) * 0.1
    fc_b = jax.random.normal(k_fb, (H,), jnp.float32) * 0.1
    agg_w = jax.random.normal(k_aw, (H, H), jnp.float32) * 0.1
    agg_b = jax.random.normal(k_ab, (H,), jnp.float32) * 0.1

    # Small case: B=2 exercises the batch-fold padding path (single grid step).
    x1 = make_inputs(k_x1, 2, A, D, jnp.float32)
    out1 = jax.block_until_ready(influence_encoder(x1, fc_w, fc_b, agg_w, agg_b))
    ref1 = influence_encoder_ref(x1, fc_w, fc_b, agg_w, agg_b)

    # Batched bf16 case: multi-step grid (R=64 folded rows, tbf=16 -> 4 steps),
    # in-kernel f32 upcast, lane-dense input/output tiles.
    x2 = make_inputs(k_x2, 256, A, D, jnp.bfloat16)
    out2 = jax.block_until_ready(influence_encoder(x2, fc_w, fc_b, agg_w, agg_b))
    ref2 = influence_encoder_ref(x2, fc_w, fc_b, agg_w, agg_b)

    # Tolerance is looser than pure f32 because the kernel uses
    # pl.reciprocal(approx=True) for the distance weight and MXU default
    # precision for the selector matmuls (perf review accepted).
    np.testing.assert_allclose(np.asarray(out1), np.asarray(ref1), rtol=2e-2, atol=1e-2)
    np.testing.assert_allclose(np.asarray(out2), np.asarray(ref2), rtol=2e-2, atol=1e-2)

    print("KERNEL_OK")
</pallas_src>

<mosaic_0001>
module attributes {stable_mosaic.version = 11 : i64} {
  func.func @influence_kernel(%arg0: i32, %arg1: memref<1x512xf32, #tpu.memory_space<vmem>>, %arg2: memref<512x1024xf32, #tpu.memory_space<vmem>>, %arg3: memref<1x1024xf32, #tpu.memory_space<vmem>>, %arg4: memref<512x32xf32, #tpu.memory_space<vmem>>, %arg5: memref<512x32xf32, #tpu.memory_space<vmem>>, %arg6: memref<512x32xf32, #tpu.memory_space<vmem>>, %arg7: memref<32x32xf32, #tpu.memory_space<vmem>>, %arg8: memref<32x1024xf32, #tpu.memory_space<vmem>>, %arg9: memref<1024x128xf32, #tpu.memory_space<vmem>>, %arg10: memref<1x128xf32, #tpu.memory_space<vmem>>, %arg11: memref<1x128xf32, #tpu.memory_space<vmem>>) attributes {dimension_semantics = [#tpu.dimension_semantics<parallel>], iteration_bounds = array<i64: 1>, scalar_prefetch = 0 : i64, scratch_operands = 0 : i64, tpu.core_type = #tpu.core_type<tc>, window_params = [{transform_indices = @transform_0, window_bounds = array<i64: 1, 512>}, {pipeline_mode = #tpu.pipeline_mode<synchronous>, transform_indices = @transform_1, window_bounds = array<i64: 512, 1024>}, {pipeline_mode = #tpu.pipeline_mode<synchronous>, transform_indices = @transform_2, window_bounds = array<i64: 1, 1024>}, {pipeline_mode = #tpu.pipeline_mode<synchronous>, transform_indices = @transform_3, window_bounds = array<i64: 512, 32>}, {pipeline_mode = #tpu.pipeline_mode<synchronous>, transform_indices = @transform_4, window_bounds = array<i64: 512, 32>}, {pipeline_mode = #tpu.pipeline_mode<synchronous>, transform_indices = @transform_5, window_bounds = array<i64: 512, 32>}, {pipeline_mode = #tpu.pipeline_mode<synchronous>, transform_indices = @transform_6, window_bounds = array<i64: 32, 32>}, {pipeline_mode = #tpu.pipeline_mode<synchronous>, transform_indices = @transform_7, window_bounds = array<i64: 32, 1024>}, {pipeline_mode = #tpu.pipeline_mode<synchronous>, transform_indices = @transform_8, window_bounds = array<i64: 1024, 128>}, {pipeline_mode = #tpu.pipeline_mode<synchronous>, transform_indices = @transform_9, window_bounds = array<i64: 1, 128>}, {transform_indices = @transform_10, window_bounds = array<i64: 1, 128>}]} {
    %c0 = arith.constant 0 : index
    %c0_0 = arith.constant 0 : index
    %0 = vector.load %arg1[%c0, %c0_0] : memref<1x512xf32, #tpu.memory_space<vmem>>, vector<1x512xf32>
    %c0_1 = arith.constant 0 : index
    %c0_2 = arith.constant 0 : index
    %1 = vector.load %arg4[%c0_1, %c0_2] : memref<512x32xf32, #tpu.memory_space<vmem>>, vector<512x32xf32>
    %cst = arith.constant dense<0.000000e+00> : vector<1x32xf32>
    %2 = tpu.matmul %0, %1, %cst {dimension_numbers = #tpu.dot_dimension_numbers<[1], [0], [0], [1], [0, 0, 1, 1], [], []>} : vector<1x512xf32>, vector<512x32xf32>, vector<1x32xf32> -> vector<1x32xf32>
    %c0_3 = arith.constant 0 : index
    %c0_4 = arith.constant 0 : index
    %3 = vector.load %arg5[%c0_3, %c0_4] : memref<512x32xf32, #tpu.memory_space<vmem>>, vector<512x32xf32>
    %cst_5 = arith.constant dense<0.000000e+00> : vector<1x32xf32>
    %4 = tpu.matmul %0, %3, %cst_5 {dimension_numbers = #tpu.dot_dimension_numbers<[1], [0], [0], [1], [0, 0, 1, 1], [], []>} : vector<1x512xf32>, vector<512x32xf32>, vector<1x32xf32> -> vector<1x32xf32>
    %c0_6 = arith.constant 0 : index
    %c0_7 = arith.constant 0 : index
    %5 = vector.load %arg6[%c0_6, %c0_7] : memref<512x32xf32, #tpu.memory_space<vmem>>, vector<512x32xf32>
    %cst_8 = arith.constant dense<0.000000e+00> : vector<1x32xf32>
    %6 = tpu.matmul %0, %5, %cst_8 {dimension_numbers = #tpu.dot_dimension_numbers<[1], [0], [0], [1], [0, 0, 1, 1], [], []>} : vector<1x512xf32>, vector<512x32xf32>, vector<1x32xf32> -> vector<1x32xf32>
    %7 = arith.mulf %2, %2 : vector<1x32xf32>
    %8 = arith.mulf %4, %4 : vector<1x32xf32>
    %9 = arith.addf %7, %8 : vector<1x32xf32>
    %10 = math.sqrt %9 : vector<1x32xf32>
    %cst_9 = arith.constant 1.000000e+00 : f32
    %11 = vector.broadcast %cst_9 : f32 to vector<1x32xf32>
    %12 = arith.addf %10, %11 : vector<1x32xf32>
    %13 = tpu.reciprocal %12 {approx = true} : vector<1x32xf32> -> vector<1x32xf32>
    %cst_10 = arith.constant 1.000000e+00 : f32
    %14 = vector.broadcast %cst_10 : f32 to vector<1x32xf32>
    %15 = arith.cmpf oeq, %6, %14 : vector<1x32xf32>
    %cst_11 = arith.constant 5.000000e+00 : f32
    %cst_12 = arith.constant 1.000000e+00 : f32
    %16 = vector.broadcast %cst_11 : f32 to vector<1x32xf32>
    %17 = vector.broadcast %cst_12 : f32 to vector<1x32xf32>
    %18 = arith.select %15, %16, %17 : vector<1x32xi1>, vector<1x32xf32>
    %19 = arith.mulf %13, %18 : vector<1x32xf32>
    %c0_13 = arith.constant 0 : index
    %c0_14 = arith.constant 0 : index
    %20 = vector.load %arg7[%c0_13, %c0_14] : memref<32x32xf32, #tpu.memory_space<vmem>>, vector<32x32xf32>
    %cst_15 = arith.constant dense<0.000000e+00> : vector<1x32xf32>
    %21 = tpu.matmul %19, %20, %cst_15 {dimension_numbers = #tpu.dot_dimension_numbers<[1], [0], [0], [1], [0, 0, 1, 1], [], []>} : vector<1x32xf32>, vector<32x32xf32>, vector<1x32xf32> -> vector<1x32xf32>
    %cst_16 = arith.constant 1.000000e-10 : f32
    %22 = vector.broadcast %cst_16 : f32 to vector<1x32xf32>
    %23 = arith.addf %21, %22 : vector<1x32xf32>
    %24 = arith.divf %19, %23 : vector<1x32xf32>
    %c0_17 = arith.constant 0 : index
    %c0_18 = arith.constant 0 : index
    %25 = vector.load %arg8[%c0_17, %c0_18] : memref<32x1024xf32, #tpu.memory_space<vmem>>, vector<32x1024xf32>
    %cst_19 = arith.constant dense<0.000000e+00> : vector<1x1024xf32>
    %26 = tpu.matmul %24, %25, %cst_19 {dimension_numbers = #tpu.dot_dimension_numbers<[1], [0], [0], [1], [0, 0, 1, 1], [], []>} : vector<1x32xf32>, vector<32x1024xf32>, vector<1x1024xf32> -> vector<1x1024xf32>
    %c0_20 = arith.constant 0 : index
    %c0_21 = arith.constant 0 : index
    %27 = vector.load %arg2[%c0_20, %c0_21] : memref<512x1024xf32, #tpu.memory_space<vmem>>, vector<512x1024xf32>
    %cst_22 = arith.constant dense<0.000000e+00> : vector<1x1024xf32>
    %28 = tpu.matmul %0, %27, %cst_22 {dimension_numbers = #tpu.dot_dimension_numbers<[1], [0], [0], [1], [0, 0, 1, 1], [], []>} : vector<1x512xf32>, vector<512x1024xf32>, vector<1x1024xf32> -> vector<1x1024xf32>
    %c0_23 = arith.constant 0 : index
    %c0_24 = arith.constant 0 : index
    %29 = vector.load %arg3[%c0_23, %c0_24] : memref<1x1024xf32, #tpu.memory_space<vmem>>, vector<1x1024xf32>
    %30 = arith.addf %28, %29 : vector<1x1024xf32>
    %cst_25 = arith.constant 0.000000e+00 : f32
    %31 = vector.broadcast %cst_25 : f32 to vector<1x1024xf32>
    %32 = arith.maximumf %30, %31 : vector<1x1024xf32>
    %33 = arith.mulf %32, %26 : vector<1x1024xf32>
    %c0_26 = arith.constant 0 : index
    %c0_27 = arith.constant 0 : index
    %34 = vector.load %arg9[%c0_26, %c0_27] : memref<1024x128xf32, #tpu.memory_space<vmem>>, vector<1024x128xf32>
    %cst_28 = arith.constant dense<0.000000e+00> : vector<1x128xf32>
    %35 = tpu.matmul %33, %34, %cst_28 {dimension_numbers = #tpu.dot_dimension_numbers<[1], [0], [0], [1], [0, 0, 1, 1], [], []>} : vector<1x1024xf32>, vector<1024x128xf32>, vector<1x128xf32> -> vector<1x128xf32>
    %c0_29 = arith.constant 0 : index
    %c0_30 = arith.constant 0 : index
    %36 = vector.load %arg10[%c0_29, %c0_30] : memref<1x128xf32, #tpu.memory_space<vmem>>, vector<1x128xf32>
    %37 = arith.addf %35, %36 : vector<1x128xf32>
    %c0_31 = arith.constant 0 : index
    %c0_32 = arith.constant 0 : index
    %38 = vector.load %arg11[%c0_31, %c0_32] : memref<1x128xf32, #tpu.memory_space<vmem>>, vector<1x128xf32>
    tpu.vector_store %arg11[%c0_31, %c0_32], %37 {strides = array<i32>} : memref<1x128xf32, #tpu.memory_space<vmem>>, vector<1x128xf32>,
    return
  }
  func.func @transform_0(%arg0: i32) -> (i32, i32) {
    %c0_i32 = arith.constant 0 : i32
    %c0_i32_0 = arith.constant 0 : i32
    return %arg0, %c0_i32 : i32, i32
  }
  func.func @transform_1(%arg0: i32) -> (i32, i32) {
    %c0_i32 = arith.constant 0 : i32
    %c0_i32_0 = arith.constant 0 : i32
    %c0_i32_1 = arith.constant 0 : i32
    return %c0_i32, %c0_i32_0 : i32, i32
  }
  func.func @transform_2(%arg0: i32) -> (i32, i32) {
    %c0_i32 = arith.constant 0 : i32
    %c0_i32_0 = arith.constant 0 : i32
    %c0_i32_1 = arith.constant 0 : i32
    return %c0_i32, %c0_i32_0 : i32, i32
  }
  func.func @transform_3(%arg0: i32) -> (i32, i32) {
    %c0_i32 = arith.constant 0 : i32
    %c0_i32_0 = arith.constant 0 : i32
    %c0_i32_1 = arith.constant 0 : i32
    return %c0_i32, %c0_i32_0 : i32, i32
  }
  func.func @transform_4(%arg0: i32) -> (i32, i32) {
    %c0_i32 = arith.constant 0 : i32
    %c0_i32_0 = arith.constant 0 : i32
    %c0_i32_1 = arith.constant 0 : i32
    return %c0_i32, %c0_i32_0 : i32, i32
  }
  func.func @transform_5(%arg0: i32) -> (i32, i32) {
    %c0_i32 = arith.constant 0 : i32
    %c0_i32_0 = arith.constant 0 : i32
    %c0_i32_1 = arith.constant 0 : i32
    return %c0_i32, %c0_i32_0 : i32, i32
  }
  func.func @transform_6(%arg0: i32) -> (i32, i32) {
    %c0_i32 = arith.constant 0 : i32
    %c0_i32_0 = arith.constant 0 : i32
    %c0_i32_1 = arith.constant 0 : i32
    return %c0_i32, %c0_i32_0 : i32, i32
  }
  func.func @transform_7(%arg0: i32) -> (i32, i32) {
    %c0_i32 = arith.constant 0 : i32
    %c0_i32_0 = arith.constant 0 : i32
    %c0_i32_1 = arith.constant 0 : i32
    return %c0_i32, %c0_i32_0 : i32, i32
  }
  func.func @transform_8(%arg0: i32) -> (i32, i32) {
    %c0_i32 = arith.constant 0 : i32
    %c0_i32_0 = arith.constant 0 : i32
    %c0_i32_1 = arith.constant 0 : i32
    return %c0_i32, %c0_i32_0 : i32, i32
  }
  func.func @transform_9(%arg0: i32) -> (i32, i32) {
    %c0_i32 = arith.constant 0 : i32
    %c0_i32_0 = arith.constant 0 : i32
    %c0_i32_1 = arith.constant 0 : i32
    return %c0_i32, %c0_i32_0 : i32, i32
  }
  func.func @transform_10(%arg0: i32) -> (i32, i32) {
    %c0_i32 = arith.constant 0 : i32
    %c0_i32_0 = arith.constant 0 : i32
    return %arg0, %c0_i32 : i32, i32
  }
}

</mosaic_0001>

<llo_original>
// kernel: tpu_custom_call.1
$region0: #{tpu_custom_call.1}
  #allocation0 [shape = 'u32[]', space=smem, size = 0x4, offset = 0x4, fixed_abs, tag = 'smem constant byte address 0x4 - core index']
  #allocation1 [shape = 'u32[72,128]{1,0:T(1,128)}', space=vmem, size = 0x9000, scoped, tag = 'internal scratch']
  %s0 = inlined_call_operand.hbm [shape: f32[1,512], index: 0, kind: input, shape index: {}]
  %s1 = inlined_call_operand.hbm [shape: f32[512,1024], index: 1, kind: input, shape index: {}]
  %s2 = inlined_call_operand.hbm [shape: f32[1,1024], index: 2, kind: input, shape index: {}]
  %s3 = inlined_call_operand.vmem [shape: f32[512,32], index: 3, kind: input, shape index: {}]
  %s4 = inlined_call_operand.vmem [shape: f32[512,32], index: 4, kind: input, shape index: {}]
  %s5 = inlined_call_operand.vmem [shape: f32[512,32], index: 5, kind: input, shape index: {}]
  %s6 = inlined_call_operand.hbm [shape: f32[32,32], index: 6, kind: input, shape index: {}]
  %s7 = inlined_call_operand.hbm [shape: f32[32,1024], index: 7, kind: input, shape index: {}]
  %s8 = inlined_call_operand.hbm [shape: f32[1024,128], index: 8, kind: input, shape index: {}]
  %s9 = inlined_call_operand.hbm [shape: f32[1,128], index: 9, kind: input, shape index: {}]
  %s10 = inlined_call_operand.hbm [shape: f32[1,128], index: 10, kind: output, shape index: {}]
  %s11 = sld [smem:[#allocation0]]
  $region78: #{tpu_custom_call.1} parent=0
    _
  %s13 = ssub.s32 1, %s11
  %s14 = scalar_select 0, %s13, %s11
  $region1: #{tpu_custom_call.1} parent=0
    #allocation2 [shape = 'u8[2048]{0}', space=vmem, size = 0x800, scoped, tag = 'input window, operand 0, single buffered']
    #allocation3 [shape = 's32[1]{0}', space=sflag, size = 0x4, scoped, tag = 'scoped memory for tpu_custom_call.1']
    #allocation4 [shape = 's32[1]{0}', space=sflag, size = 0x4, scoped, tag = 'scoped memory for tpu_custom_call.1']
    #allocation5 [shape = 'u8[2097152]{0}', space=vmem, size = 0x200000, scoped, tag = 'input window, operand 1, single buffered']
    #allocation6 [shape = 's32[1]{0}', space=sflag, size = 0x4, scoped, tag = 'scoped memory for tpu_custom_call.1']
    #allocation7 [shape = 'u8[4096]{0}', space=vmem, size = 0x1000, scoped, tag = 'input window, operand 2, single buffered']
    #allocation8 [shape = 'u8[16384]{0}', space=vmem, size = 0x4000, scoped, tag = 'input window, operand 6, single buffered']
    #allocation9 [shape = 's32[1]{0}', space=sflag, size = 0x4, scoped, tag = 'scoped memory for tpu_custom_call.1']
    #allocation10 [shape = 'u8[131072]{0}', space=vmem, size = 0x20000, scoped, tag = 'input window, operand 7, single buffered']
    #allocation11 [shape = 'u8[524288]{0}', space=vmem, size = 0x80000, scoped, tag = 'input window, operand 8, single buffered']
    #allocation12 [shape = 's32[1]{0}', space=sflag, size = 0x4, scoped, tag = 'scoped memory for tpu_custom_call.1']
    #allocation13 [shape = 'u8[512]{0}', space=vmem, size = 0x400, scoped, tag = 'input window, operand 9, single buffered']
    #allocation14 [shape = 'u8[512]{0}', space=vmem, size = 0x400, scoped, tag = 'output window, operand 0, single buffered']
    %15 = vsyncpa [#allocation3], 0
    %16 = vsyncpa [#allocation6], 0
    %17 = vsyncpa [#allocation9], 0
    %18 = vsyncpa [#allocation12], 0
    %19 = vsyncpa [#allocation4], 0
    // Predicated region
    $region2: #{tpu_custom_call.1} parent=1 // pred_check
      _
    $region3: #{tpu_custom_call.1} parent=1 // pred_check_branch
      %21 = sbr.rel (0) target = $region5
    $region4: #{tpu_custom_call.1} parent=1 // pred_region
      %23 = vsyncadd [#allocation3], 0
      %s25 = sshll.u32 %s0, 4
      %s26 = int_to_ptr.hbm [resolvable:$true] %s25
      %s27 = sshll.u32 [#allocation2], 4
      %s28 = int_to_ptr.vmem [resolvable:$true] %s27
      %30 = dma.hbm_to_vmem [thread:$0]  %s26, 64, %s28, [#allocation3]
    $region5: #{tpu_custom_call.1} parent=1 // pred_fallthru
      _
    // Predicated region
    $region6: #{tpu_custom_call.1} parent=1 // pred_check
      _
    $region7: #{tpu_custom_call.1} parent=1 // pred_check_branch
      %32 = sbr.rel (0) target = $region9
    $region8: #{tpu_custom_call.1} parent=1 // pred_region
      %34 = vsyncadd [#allocation6], 0
      %s35 = sshll.u32 %s1, 4
      %s36 = int_to_ptr.hbm [resolvable:$true] %s35
      %s37 = sshll.u32 [#allocation5], 4
      %s38 = int_to_ptr.vmem [resolvable:$true] %s37
      %43 = dma.hbm_to_vmem [thread:$0]  %s36, 65536, %s38, [#allocation6], 1024, 1024, 64
    $region9: #{tpu_custom_call.1} parent=1 // pred_fallthru
      _
    // Predicated region
    $region10: #{tpu_custom_call.1} parent=1 // pred_check
      _
    $region11: #{tpu_custom_call.1} parent=1 // pred_check_branch
      %45 = sbr.rel (0) target = $region13
    $region12: #{tpu_custom_call.1} parent=1 // pred_region
      %47 = vsyncadd [#allocation6], 0
      %s49 = sshll.u32 %s2, 4
      %s50 = int_to_ptr.hbm [resolvable:$true] %s49
      %s51 = sshll.u32 [#allocation7], 4
      %s52 = int_to_ptr.vmem [resolvable:$true] %s51
      %54 = dma.hbm_to_vmem [thread:$0]  %s50, 128, %s52, [#allocation6]
    $region13: #{tpu_custom_call.1} parent=1 // pred_fallthru
      _
    // Predicated region
    $region14: #{tpu_custom_call.1} parent=1 // pred_check
      _
    $region15: #{tpu_custom_call.1} parent=1 // pred_check_branch
      %56 = sbr.rel (0) target = $region17
    $region16: #{tpu_custom_call.1} parent=1 // pred_region
      _
    $region17: #{tpu_custom_call.1} parent=1 // pred_fallthru
      _
    // Predicated region
    $region18: #{tpu_custom_call.1} parent=1 // pred_check
      _
    $region19: #{tpu_custom_call.1} parent=1 // pred_check_branch
      %58 = sbr.rel (0) target = $region21
    $region20: #{tpu_custom_call.1} parent=1 // pred_region
      _
    $region21: #{tpu_custom_call.1} parent=1 // pred_fallthru
      _
    // Predicated region
    $region22: #{tpu_custom_call.1} parent=1 // pred_check
      _
    $region23: #{tpu_custom_call.1} parent=1 // pred_check_branch
      %60 = sbr.rel (0) target = $region25
    $region24: #{tpu_custom_call.1} parent=1 // pred_region
      _
    $region25: #{tpu_custom_call.1} parent=1 // pred_fallthru
      _
    // Predicated region
    $region26: #{tpu_custom_call.1} parent=1 // pred_check
      _
    $region27: #{tpu_custom_call.1} parent=1 // pred_check_branch
      %62 = sbr.rel (0) target = $region29
    $region28: #{tpu_custom_call.1} parent=1 // pred_region
      %64 = vsyncadd [#allocation9], 0
      %s65 = sshll.u32 %s6, 4
      %s66 = int_to_ptr.hbm [resolvable:$true] %s65
      %s67 = sshll.u32 [#allocation8], 4
      %s68 = int_to_ptr.vmem [resolvable:$true] %s67
      %73 = dma.hbm_to_vmem [thread:$0]  %s66, 512, %s68, [#allocation9], 128, 128, 8
    $region29: #{tpu_custom_call.1} parent=1 // pred_fallthru
      _
    // Predicated region
    $region30: #{tpu_custom_call.1} parent=1 // pred_check
      _
    $region31: #{tpu_custom_call.1} parent=1 // pred_check_branch
      %75 = sbr.rel (0) target = $region33
    $region32: #{tpu_custom_call.1} parent=1 // pred_region
      %77 = vsyncadd [#allocation9], 0
      %s78 = sshll.u32 %s7, 4
      %s79 = int_to_ptr.hbm [resolvable:$true] %s78
      %s80 = sshll.u32 [#allocation10], 4
      %s81 = int_to_ptr.vmem [resolvable:$true] %s80
      %86 = dma.hbm_to_vmem [thread:$0]  %s79, 4096, %s81, [#allocation9], 1024, 1024, 64
    $region33: #{tpu_custom_call.1} parent=1 // pred_fallthru
      _
    // Predicated region
    $region34: #{tpu_custom_call.1} parent=1 // pred_check
      _
    $region35: #{tpu_custom_call.1} parent=1 // pred_check_branch
      %88 = sbr.rel (0) target = $region37
    $region36: #{tpu_custom_call.1} parent=1 // pred_region
      %90 = vsyncadd [#allocation12], 0
      %s91 = sshll.u32 %s8, 4
      %s92 = int_to_ptr.hbm [resolvable:$true] %s91
      %s93 = sshll.u32 [#allocation11], 4
      %s94 = int_to_ptr.vmem [resolvable:$true] %s93
      %99 = dma.hbm_to_vmem [thread:$0]  %s92, 16384, %s94, [#allocation12], 128, 128, 8
    $region37: #{tpu_custom_call.1} parent=1 // pred_fallthru
      _
    // Predicated region
    $region38: #{tpu_custom_call.1} parent=1 // pred_check
      _
    $region39: #{tpu_custom_call.1} parent=1 // pred_check_branch
      %101 = sbr.rel (0) target = $region41
    $region40: #{tpu_custom_call.1} parent=1 // pred_region
      %103 = vsyncadd [#allocation12], 0
      %s105 = sshll.u32 %s9, 4
      %s106 = int_to_ptr.hbm [resolvable:$true] %s105
      %s107 = sshll.u32 [#allocation13], 4
      %s108 = int_to_ptr.vmem [resolvable:$true] %s107
      %110 = dma.hbm_to_vmem [thread:$0]  %s106, 16, %s108, [#allocation12]
    $region41: #{tpu_custom_call.1} parent=1 // pred_fallthru
      _
    // Predicated region
    $region42: #{tpu_custom_call.1} parent=1 // pred_check
      _
    $region43: #{tpu_custom_call.1} parent=1 // pred_check_branch
      %112 = sbr.rel (0) target = $region45
    $region44: #{tpu_custom_call.1} parent=1 // pred_region
      %114 = dma.done [#allocation3], 64
    $region45: #{tpu_custom_call.1} parent=1 // pred_fallthru
      _
    // Predicated region
    $region46: #{tpu_custom_call.1} parent=1 // pred_check
      _
    $region47: #{tpu_custom_call.1} parent=1 // pred_check_branch
      %116 = sbr.rel (0) target = $region49
    $region48: #{tpu_custom_call.1} parent=1 // pred_region
      %118 = dma.done [#allocation6], 65536
    $region49: #{tpu_custom_call.1} parent=1 // pred_fallthru
      _
    // Predicated region
    $region50: #{tpu_custom_call.1} parent=1 // pred_check
      _
    $region51: #{tpu_custom_call.1} parent=1 // pred_check_branch
      %120 = sbr.rel (0) target = $region53
    $region52: #{tpu_custom_call.1} parent=1 // pred_region
      %122 = dma.done [#allocation6], 128
    $region53: #{tpu_custom_call.1} parent=1 // pred_fallthru
      _
    // Predicated region
    $region54: #{tpu_custom_call.1} parent=1 // pred_check
      _
    $region55: #{tpu_custom_call.1} parent=1 // pred_check_branch
      %124 = sbr.rel (0) target = $region57
    $region56: #{tpu_custom_call.1} parent=1 // pred_region
      %126 = dma.done [#allocation9], 512
    $region57: #{tpu_custom_call.1} parent=1 // pred_fallthru
      _
    // Predicated region
    $region58: #{tpu_custom_call.1} parent=1 // pred_check
      _
    $region59: #{tpu_custom_call.1} parent=1 // pred_check_branch
      %128 = sbr.rel (0) target = $region61
    $region60: #{tpu_custom_call.1} parent=1 // pred_region
      %130 = dma.done [#allocation9], 4096
    $region61: #{tpu_custom_call.1} parent=1 // pred_fallthru
      _
    // Predicated region
    $region62: #{tpu_custom_call.1} parent=1 // pred_check
      _
    $region63: #{tpu_custom_call.1} parent=1 // pred_check_branch
      %132 = sbr.rel (0) target = $region65
    $region64: #{tpu_custom_call.1} parent=1 // pred_region
      %134 = dma.done [#allocation12], 16384
    $region65: #{tpu_custom_call.1} parent=1 // pred_fallthru
      _
    // Predicated region
    $region66: #{tpu_custom_call.1} parent=1 // pred_check
      _
    $region67: #{tpu_custom_call.1} parent=1 // pred_check_branch
      %136 = sbr.rel (0) target = $region69
    $region68: #{tpu_custom_call.1} parent=1 // pred_region
      %138 = dma.done [#allocation12], 16
    $region69: #{tpu_custom_call.1} parent=1 // pred_fallthru
      _
    %v139 = vld [vmem:[#allocation2] sm:$0xf]
    %v140 = vld [vmem:[%s3] sm:$0xff]
    %v141 = vld [vmem:[%s3 + $0x8] sm:$0xff]
    %v142 = vld [vmem:[%s3 + $0x10] sm:$0xff]
    %v143 = vld [vmem:[%s3 + $0x18] sm:$0xff]
    %v144 = vld [vmem:[%s3 + $0x20] sm:$0xff]
    %v145 = vld [vmem:[%s3 + $0x28] sm:$0xff]
    %v146 = vld [vmem:[%s3 + $0x30] sm:$0xff]
    %v147 = vld [vmem:[%s3 + $0x38] sm:$0xff]
    %v148 = vld [vmem:[%s3 + $0x40] sm:$0xff]
    %v149 = vld [vmem:[%s3 + $0x48] sm:$0xff]
    %v150 = vld [vmem:[%s3 + $0x50] sm:$0xff]
    %v151 = vld [vmem:[%s3 + $0x58] sm:$0xff]
    %v152 = vld [vmem:[%s3 + $0x60] sm:$0xff]
    %v153 = vld [vmem:[%s3 + $0x68] sm:$0xff]
    %v154 = vld [vmem:[%s3 + $0x70] sm:$0xff]
    %v155 = vld [vmem:[%s3 + $0x78] sm:$0xff]
    %v156 = vld [vmem:[%s3 + $0x80] sm:$0xff]
    %v157 = vld [vmem:[%s3 + $0x88] sm:$0xff]
    %v158 = vld [vmem:[%s3 + $0x90] sm:$0xff]
    %v159 = vld [vmem:[%s3 + $0x98] sm:$0xff]
    %v160 = vld [vmem:[%s3 + $0xa0] sm:$0xff]
    %v161 = vld [vmem:[%s3 + $0xa8] sm:$0xff]
    %v162 = vld [vmem:[%s3 + $0xb0] sm:$0xff]
    %v163 = vld [vmem:[%s3 + $0xb8] sm:$0xff]
    %v164 = vld [vmem:[%s3 + $0xc0] sm:$0xff]
    %v165 = vld [vmem:[%s3 + $0xc8] sm:$0xff]
    %v166 = vld [vmem:[%s3 + $0xd0] sm:$0xff]
    %v167 = vld [vmem:[%s3 + $0xd8] sm:$0xff]
    %v168 = vld [vmem:[%s3 + $0xe0] sm:$0xff]
    %v169 = vld [vmem:[%s3 + $0xe8] sm:$0xff]
    %v170 = vld [vmem:[%s3 + $0xf0] sm:$0xff]
    %v171 = vld [vmem:[%s3 + $0xf8] sm:$0xff]
    %v172 = vld [vmem:[%s3 + $0x100] sm:$0xff]
    %v173 = vld [vmem:[%s3 + $0x108] sm:$0xff]
    %v174 = vld [vmem:[%s3 + $0x110] sm:$0xff]
    %v175 = vld [vmem:[%s3 + $0x118] sm:$0xff]
    %v176 = vld [vmem:[%s3 + $0x120] sm:$0xff]
    %v177 = vld [vmem:[%s3 + $0x128] sm:$0xff]
    %v178 = vld [vmem:[%s3 + $0x130] sm:$0xff]
    %v179 = vld [vmem:[%s3 + $0x138] sm:$0xff]
    %v180 = vld [vmem:[%s3 + $0x140] sm:$0xff]
    %v181 = vld [vmem:[%s3 + $0x148] sm:$0xff]
    %v182 = vld [vmem:[%s3 + $0x150] sm:$0xff]
    %v183 = vld [vmem:[%s3 + $0x158] sm:$0xff]
    %v184 = vld [vmem:[%s3 + $0x160] sm:$0xff]
    %v185 = vld [vmem:[%s3 + $0x168] sm:$0xff]
    %v186 = vld [vmem:[%s3 + $0x170] sm:$0xff]
    %v187 = vld [vmem:[%s3 + $0x178] sm:$0xff]
    %v188 = vld [vmem:[%s3 + $0x180] sm:$0xff]
    %v189 = vld [vmem:[%s3 + $0x188] sm:$0xff]
    %v190 = vld [vmem:[%s3 + $0x190] sm:$0xff]
    %v191 = vld [vmem:[%s3 + $0x198] sm:$0xff]
    %v192 = vld [vmem:[%s3 + $0x1a0] sm:$0xff]
    %v193 = vld [vmem:[%s3 + $0x1a8] sm:$0xff]
    %v194 = vld [vmem:[%s3 + $0x1b0] sm:$0xff]
    %v195 = vld [vmem:[%s3 + $0x1b8] sm:$0xff]
    %v196 = vld [vmem:[%s3 + $0x1c0] sm:$0xff]
    %v197 = vld [vmem:[%s3 + $0x1c8] sm:$0xff]
    %v198 = vld [vmem:[%s3 + $0x1d0] sm:$0xff]
    %v199 = vld [vmem:[%s3 + $0x1d8] sm:$0xff]
    %v200 = vld [vmem:[%s3 + $0x1e0] sm:$0xff]
    %v201 = vld [vmem:[%s3 + $0x1e8] sm:$0xff]
    %v202 = vld [vmem:[%s3 + $0x1f0] sm:$0xff]
    %v203 = vld [vmem:[%s3 + $0x1f8] sm:$0xff]
    %v205 = vperm.slane %v139, 0
    %v206 = vperm.slane %v139, 1
    %v207 = vperm.slane %v139, 2
    %v208 = vperm.slane %v139, 3
    %213 = vmatpush.msra.mxu0 %v155
    %214 = vmatpush.msra.mxu0 %v154
    %215 = vmatpush.msra.mxu0 %v153
    %216 = vmatpush.msra.mxu0 %v152
    %217 = vmatpush.msra.mxu0 %v151
    %218 = vmatpush.msra.mxu0 %v150
    %219 = vmatpush.msra.mxu0 %v149
    %220 = vmatpush.msra.mxu0 %v148
    %221 = vmatpush.msra.mxu0 %v147
    %222 = vmatpush.msra.mxu0 %v146
    %223 = vmatpush.msra.mxu0 %v145
    %224 = vmatpush.msra.mxu0 %v144
    %225 = vmatpush.msra.mxu0 %v143
    %226 = vmatpush.msra.mxu0 %v142
    %227 = vmatpush.msra.mxu0 %v141
    %228 = vmatpush.msra.mxu0 %v140
    %229 = vmatmul.f32.gmra.mxu0 %v205
    %v230 = vpop.f32.mrf.mxu0
    %v231 = vadd.f32 0.0, %v230
    %232 = vdwg.mxu0
    %233 = vmatpush.msra.mxu0 %v171
    %234 = vmatpush.msra.mxu0 %v170
    %235 = vmatpush.msra.mxu0 %v169
    %236 = vmatpush.msra.mxu0 %v168
    %237 = vmatpush.msra.mxu0 %v167
    %238 = vmatpush.msra.mxu0 %v166
    %239 = vmatpush.msra.mxu0 %v165
    %240 = vmatpush.msra.mxu0 %v164
    %241 = vmatpush.msra.mxu0 %v163
    %242 = vmatpush.msra.mxu0 %v162
    %243 = vmatpush.msra.mxu0 %v161
    %244 = vmatpush.msra.mxu0 %v160
    %245 = vmatpush.msra.mxu0 %v159
    %246 = vmatpush.msra.mxu0 %v158
    %247 = vmatpush.msra.mxu0 %v157
    %248 = vmatpush.msra.mxu0 %v156
    %249 = vmatmul.f32.gmra.mxu0 %v206
    %v250 = vpop.f32.mrf.mxu0
    %v251 = vadd.f32 %v231, %v250
    %252 = vdwg.mxu0
    %253 = vmatpush.msra.mxu0 %v187
    %254 = vmatpush.msra.mxu0 %v186
    %255 = vmatpush.msra.mxu0 %v185
    %256 = vmatpush.msra.mxu0 %v184
    %257 = vmatpush.msra.mxu0 %v183
    %258 = vmatpush.msra.mxu0 %v182
    %259 = vmatpush.msra.mxu0 %v181
    %260 = vmatpush.msra.mxu0 %v180
    %261 = vmatpush.msra.mxu0 %v179
    %262 = vmatpush.msra.mxu0 %v178
    %263 = vmatpush.msra.mxu0 %v177
    %264 = vmatpush.msra.mxu0 %v176
    %265 = vmatpush.msra.mxu0 %v175
    %266 = vmatpush.msra.mxu0 %v174
    %267 = vmatpush.msra.mxu0 %v173
    %268 = vmatpush.msra.mxu0 %v172
    %269 = vmatmul.f32.gmra.mxu0 %v207
    %v270 = vpop.f32.mrf.mxu0
    %v271 = vadd.f32 %v251, %v270
    %272 = vdwg.mxu0
    %273 = vmatpush.msra.mxu0 %v203
    %274 = vmatpush.msra.mxu0 %v202
    %275 = vmatpush.msra.mxu0 %v201
    %276 = vmatpush.msra.mxu0 %v200
    %277 = vmatpush.msra.mxu0 %v199
    %278 = vmatpush.msra.mxu0 %v198
    %279 = vmatpush.msra.mxu0 %v197
    %280 = vmatpush.msra.mxu0 %v196
    %281 = vmatpush.msra.mxu0 %v195
    %282 = vmatpush.msra.mxu0 %v194
    %283 = vmatpush.msra.mxu0 %v193
    %284 = vmatpush.msra.mxu0 %v192
    %285 = vmatpush.msra.mxu0 %v191
    %286 = vmatpush.msra.mxu0 %v190
    %287 = vmatpush.msra.mxu0 %v189
    %288 = vmatpush.msra.mxu0 %v188
    %289 = vmatmul.f32.gmra.mxu0 %v208
    %v290 = vpop.f32.mrf.mxu0
    %v291 = vadd.f32 %v271, %v290
    %292 = vdwg.mxu0
    %v293 = vld [vmem:[%s4] sm:$0xff]
    %v294 = vld [vmem:[%s4 + $0x8] sm:$0xff]
    %v295 = vld [vmem:[%s4 + $0x10] sm:$0xff]
    %v296 = vld [vmem:[%s4 + $0x18] sm:$0xff]
    %v297 = vld [vmem:[%s4 + $0x20] sm:$0xff]
    %v298 = vld [vmem:[%s4 + $0x28] sm:$0xff]
    %v299 = vld [vmem:[%s4 + $0x30] sm:$0xff]
    %v300 = vld [vmem:[%s4 + $0x38] sm:$0xff]
    %v301 = vld [vmem:[%s4 + $0x40] sm:$0xff]
    %v302 = vld [vmem:[%s4 + $0x48] sm:$0xff]
    %v303 = vld [vmem:[%s4 + $0x50] sm:$0xff]
    %v304 = vld [vmem:[%s4 + $0x58] sm:$0xff]
    %v305 = vld [vmem:[%s4 + $0x60] sm:$0xff]
    %v306 = vld [vmem:[%s4 + $0x68] sm:$0xff]
    %v307 = vld [vmem:[%s4 + $0x70] sm:$0xff]
    %v308 = vld [vmem:[%s4 + $0x78] sm:$0xff]
    %v309 = vld [vmem:[%s4 + $0x80] sm:$0xff]
    %v310 = vld [vmem:[%s4 + $0x88] sm:$0xff]
    %v311 = vld [vmem:[%s4 + $0x90] sm:$0xff]
    %v312 = vld [vmem:[%s4 + $0x98] sm:$0xff]
    %v313 = vld [vmem:[%s4 + $0xa0] sm:$0xff]
    %v314 = vld [vmem:[%s4 + $0xa8] sm:$0xff]
    %v315 = vld [vmem:[%s4 + $0xb0] sm:$0xff]
    %v316 = vld [vmem:[%s4 + $0xb8] sm:$0xff]
    %v317 = vld [vmem:[%s4 + $0xc0] sm:$0xff]
    %v318 = vld [vmem:[%s4 + $0xc8] sm:$0xff]
    %v319 = vld [vmem:[%s4 + $0xd0] sm:$0xff]
    %v320 = vld [vmem:[%s4 + $0xd8] sm:$0xff]
    %v321 = vld [vmem:[%s4 + $0xe0] sm:$0xff]
    %v322 = vld [vmem:[%s4 + $0xe8] sm:$0xff]
    %v323 = vld [vmem:[%s4 + $0xf0] sm:$0xff]
    %v324 = vld [vmem:[%s4 + $0xf8] sm:$0xff]
    %v325 = vld [vmem:[%s4 + $0x100] sm:$0xff]
    %v326 = vld [vmem:[%s4 + $0x108] sm:$0xff]
    %v327 = vld [vmem:[%s4 + $0x110] sm:$0xff]
    %v328 = vld [vmem:[%s4 + $0x118] sm:$0xff]
    %v329 = vld [vmem:[%s4 + $0x120] sm:$0xff]
    %v330 = vld [vmem:[%s4 + $0x128] sm:$0xff]
    %v331 = vld [vmem:[%s4 + $0x130] sm:$0xff]
    %v332 = vld [vmem:[%s4 + $0x138] sm:$0xff]
    %v333 = vld [vmem:[%s4 + $0x140] sm:$0xff]
    %v334 = vld [vmem:[%s4 + $0x148] sm:$0xff]
    %v335 = vld [vmem:[%s4 + $0x150] sm:$0xff]
    %v336 = vld [vmem:[%s4 + $0x158] sm:$0xff]
    %v337 = vld [vmem:[%s4 + $0x160] sm:$0xff]
    %v338 = vld [vmem:[%s4 + $0x168] sm:$0xff]
    %v339 = vld [vmem:[%s4 + $0x170] sm:$0xff]
    %v340 = vld [vmem:[%s4 + $0x178] sm:$0xff]
    %v341 = vld [vmem:[%s4 + $0x180] sm:$0xff]
    %v342 = vld [vmem:[%s4 + $0x188] sm:$0xff]
    %v343 = vld [vmem:[%s4 + $0x190] sm:$0xff]
    %v344 = vld [vmem:[%s4 + $0x198] sm:$0xff]
    %v345 = vld [vmem:[%s4 + $0x1a0] sm:$0xff]
    %v346 = vld [vmem:[%s4 + $0x1a8] sm:$0xff]
    %v347 = vld [vmem:[%s4 + $0x1b0] sm:$0xff]
    %v348 = vld [vmem:[%s4 + $0x1b8] sm:$0xff]
    %v349 = vld [vmem:[%s4 + $0x1c0] sm:$0xff]
    %v350 = vld [vmem:[%s4 + $0x1c8] sm:$0xff]
    %v351 = vld [vmem:[%s4 + $0x1d0] sm:$0xff]
    %v352 = vld [vmem:[%s4 + $0x1d8] sm:$0xff]
    %v353 = vld [vmem:[%s4 + $0x1e0] sm:$0xff]
    %v354 = vld [vmem:[%s4 + $0x1e8] sm:$0xff]
    %v355 = vld [vmem:[%s4 + $0x1f0] sm:$0xff]
    %v356 = vld [vmem:[%s4 + $0x1f8] sm:$0xff]
    %357 = vmatpush.msra.mxu0 %v308
    %358 = vmatpush.msra.mxu0 %v307
    %359 = vmatpush.msra.mxu0 %v306
    %360 = vmatpush.msra.mxu0 %v305
    %361 = vmatpush.msra.mxu0 %v304
    %362 = vmatpush.msra.mxu0 %v303
    %363 = vmatpush.msra.mxu0 %v302
    %364 = vmatpush.msra.mxu0 %v301
    %365 = vmatpush.msra.mxu0 %v300
    %366 = vmatpush.msra.mxu0 %v299
    %367 = vmatpush.msra.mxu0 %v298
    %368 = vmatpush.msra.mxu0 %v297
    %369 = vmatpush.msra.mxu0 %v296
    %370 = vmatpush.msra.mxu0 %v295
    %371 = vmatpush.msra.mxu0 %v294
    %372 = vmatpush.msra.mxu0 %v293
    %373 = vmatmul.f32.gmra.mxu0 %v205
    %v374 = vpop.f32.mrf.mxu0
    %v375 = vadd.f32 0.0, %v374
    %376 = vdwg.mxu0
    %377 = vmatpush.msra.mxu0 %v324
    %378 = vmatpush.msra.mxu0 %v323
    %379 = vmatpush.msra.mxu0 %v322
    %380 = vmatpush.msra.mxu0 %v321
    %381 = vmatpush.msra.mxu0 %v320
    %382 = vmatpush.msra.mxu0 %v319
    %383 = vmatpush.msra.mxu0 %v318
    %384 = vmatpush.msra.mxu0 %v317
    %385 = vmatpush.msra.mxu0 %v316
    %386 = vmatpush.msra.mxu0 %v315
    %387 = vmatpush.msra.mxu0 %v314
    %388 = vmatpush.msra.mxu0 %v313
    %389 = vmatpush.msra.mxu0 %v312
    %390 = vmatpush.msra.mxu0 %v311
    %391 = vmatpush.msra.mxu0 %v310
    %392 = vmatpush.msra.mxu0 %v309
    %393 = vmatmul.f32.gmra.mxu0 %v206
    %v394 = vpop.f32.mrf.mxu0
    %v395 = vadd.f32 %v375, %v394
    %396 = vdwg.mxu0
    %397 = vmatpush.msra.mxu0 %v340
    %398 = vmatpush.msra.mxu0 %v339
    %399 = vmatpush.msra.mxu0 %v338
    %400 = vmatpush.msra.mxu0 %v337
    %401 = vmatpush.msra.mxu0 %v336
    %402 = vmatpush.msra.mxu0 %v335
    %403 = vmatpush.msra.mxu0 %v334
    %404 = vmatpush.msra.mxu0 %v333
    %405 = vmatpush.msra.mxu0 %v332
    %406 = vmatpush.msra.mxu0 %v331
    %407 = vmatpush.msra.mxu0 %v330
    %408 = vmatpush.msra.mxu0 %v329
    %409 = vmatpush.msra.mxu0 %v328
    %410 = vmatpush.msra.mxu0 %v327
    %411 = vmatpush.msra.mxu0 %v326
    %412 = vmatpush.msra.mxu0 %v325
    %413 = vmatmul.f32.gmra.mxu0 %v207
    %v414 = vpop.f32.mrf.mxu0
    %v415 = vadd.f32 %v395, %v414
    %416 = vdwg.mxu0
    %417 = vmatpush.msra.mxu0 %v356
    %418 = vmatpush.msra.mxu0 %v355
    %419 = vmatpush.msra.mxu0 %v354
    %420 = vmatpush.msra.mxu0 %v353
    %421 = vmatpush.msra.mxu0 %v352
    %422 = vmatpush.msra.mxu0 %v351
    %423 = vmatpush.msra.mxu0 %v350
    %424 = vmatpush.msra.mxu0 %v349
    %425 = vmatpush.msra.mxu0 %v348
    %426 = vmatpush.msra.mxu0 %v347
    %427 = vmatpush.msra.mxu0 %v346
    %428 = vmatpush.msra.mxu0 %v345
    %429 = vmatpush.msra.mxu0 %v344
    %430 = vmatpush.msra.mxu0 %v343
    %431 = vmatpush.msra.mxu0 %v342
    %432 = vmatpush.msra.mxu0 %v341
    %433 = vmatmul.f32.gmra.mxu0 %v208
    %v434 = vpop.f32.mrf.mxu0
    %v435 = vadd.f32 %v415, %v434
    %436 = vdwg.mxu0
    %v437 = vld [vmem:[%s5] sm:$0xff]
    %v438 = vld [vmem:[%s5 + $0x8] sm:$0xff]
    %v439 = vld [vmem:[%s5 + $0x10] sm:$0xff]
    %v440 = vld [vmem:[%s5 + $0x18] sm:$0xff]
    %v441 = vld [vmem:[%s5 + $0x20] sm:$0xff]
    %v442 = vld [vmem:[%s5 + $0x28] sm:$0xff]
    %v443 = vld [vmem:[%s5 + $0x30] sm:$0xff]
    %v444 = vld [vmem:[%s5 + $0x38] sm:$0xff]
    %v445 = vld [vmem:[%s5 + $0x40] sm:$0xff]
    %v446 = vld [vmem:[%s5 + $0x48] sm:$0xff]
    %v447 = vld [vmem:[%s5 + $0x50] sm:$0xff]
    %v448 = vld [vmem:[%s5 + $0x58] sm:$0xff]
    %v449 = vld [vmem:[%s5 + $0x60] sm:$0xff]
    %v450 = vld [vmem:[%s5 + $0x68] sm:$0xff]
    %v451 = vld [vmem:[%s5 + $0x70] sm:$0xff]
    %v452 = vld [vmem:[%s5 + $0x78] sm:$0xff]
    %v453 = vld [vmem:[%s5 + $0x80] sm:$0xff]
    %v454 = vld [vmem:[%s5 + $0x88] sm:$0xff]
    %v455 = vld [vmem:[%s5 + $0x90] sm:$0xff]
    %v456 = vld [vmem:[%s5 + $0x98] sm:$0xff]
    %v457 = vld [vmem:[%s5 + $0xa0] sm:$0xff]
    %v458 = vld [vmem:[%s5 + $0xa8] sm:$0xff]
    %v459 = vld [vmem:[%s5 + $0xb0] sm:$0xff]
    %v460 = vld [vmem:[%s5 + $0xb8] sm:$0xff]
    %v461 = vld [vmem:[%s5 + $0xc0] sm:$0xff]
    %v462 = vld [vmem:[%s5 + $0xc8] sm:$0xff]
    %v463 = vld [vmem:[%s5 + $0xd0] sm:$0xff]
    %v464 = vld [vmem:[%s5 + $0xd8] sm:$0xff]
    %v465 = vld [vmem:[%s5 + $0xe0] sm:$0xff]
    %v466 = vld [vmem:[%s5 + $0xe8] sm:$0xff]
    %v467 = vld [vmem:[%s5 + $0xf0] sm:$0xff]
    %v468 = vld [vmem:[%s5 + $0xf8] sm:$0xff]
    %v469 = vld [vmem:[%s5 + $0x100] sm:$0xff]
    %v470 = vld [vmem:[%s5 + $0x108] sm:$0xff]
    %v471 = vld [vmem:[%s5 + $0x110] sm:$0xff]
    %v472 = vld [vmem:[%s5 + $0x118] sm:$0xff]
    %v473 = vld [vmem:[%s5 + $0x120] sm:$0xff]
    %v474 = vld [vmem:[%s5 + $0x128] sm:$0xff]
    %v475 = vld [vmem:[%s5 + $0x130] sm:$0xff]
    %v476 = vld [vmem:[%s5 + $0x138] sm:$0xff]
    %v477 = vld [vmem:[%s5 + $0x140] sm:$0xff]
    %v478 = vld [vmem:[%s5 + $0x148] sm:$0xff]
    %v479 = vld [vmem:[%s5 + $0x150] sm:$0xff]
    %v480 = vld [vmem:[%s5 + $0x158] sm:$0xff]
    %v481 = vld [vmem:[%s5 + $0x160] sm:$0xff]
    %v482 = vld [vmem:[%s5 + $0x168] sm:$0xff]
    %v483 = vld [vmem:[%s5 + $0x170] sm:$0xff]
    %v484 = vld [vmem:[%s5 + $0x178] sm:$0xff]
    %v485 = vld [vmem:[%s5 + $0x180] sm:$0xff]
    %v486 = vld [vmem:[%s5 + $0x188] sm:$0xff]
    %v487 = vld [vmem:[%s5 + $0x190] sm:$0xff]
    %v488 = vld [vmem:[%s5 + $0x198] sm:$0xff]
    %v489 = vld [vmem:[%s5 + $0x1a0] sm:$0xff]
    %v490 = vld [vmem:[%s5 + $0x1a8] sm:$0xff]
    %v491 = vld [vmem:[%s5 + $0x1b0] sm:$0xff]
    %v492 = vld [vmem:[%s5 + $0x1b8] sm:$0xff]
    %v493 = vld [vmem:[%s5 + $0x1c0] sm:$0xff]
    %v494 = vld [vmem:[%s5 + $0x1c8] sm:$0xff]
    %v495 = vld [vmem:[%s5 + $0x1d0] sm:$0xff]
    %v496 = vld [vmem:[%s5 + $0x1d8] sm:$0xff]
    %v497 = vld [vmem:[%s5 + $0x1e0] sm:$0xff]
    %v498 = vld [vmem:[%s5 + $0x1e8] sm:$0xff]
    %v499 = vld [vmem:[%s5 + $0x1f0] sm:$0xff]
    %v500 = vld [vmem:[%s5 + $0x1f8] sm:$0xff]
    %501 = vmatpush.msra.mxu0 %v452
    %502 = vmatpush.msra.mxu0 %v451
    %503 = vmatpush.msra.mxu0 %v450
    %504 = vmatpush.msra.mxu0 %v449
    %505 = vmatpush.msra.mxu0 %v448
    %506 = vmatpush.msra.mxu0 %v447
    %507 = vmatpush.msra.mxu0 %v446
    %508 = vmatpush.msra.mxu0 %v445
    %509 = vmatpush.msra.mxu0 %v444
    %510 = vmatpush.msra.mxu0 %v443
    %511 = vmatpush.msra.mxu0 %v442
    %512 = vmatpush.msra.mxu0 %v441
    %513 = vmatpush.msra.mxu0 %v440
    %514 = vmatpush.msra.mxu0 %v439
    %515 = vmatpush.msra.mxu0 %v438
    %516 = vmatpush.msra.mxu0 %v437
    %517 = vmatmul.f32.gmra.mxu0 %v205
    %v518 = vpop.f32.mrf.mxu0
    %v519 = vadd.f32 0.0, %v518
    %520 = vdwg.mxu0
    %521 = vmatpush.msra.mxu0 %v468
    %522 = vmatpush.msra.mxu0 %v467
    %523 = vmatpush.msra.mxu0 %v466
    %524 = vmatpush.msra.mxu0 %v465
    %525 = vmatpush.msra.mxu0 %v464
    %526 = vmatpush.msra.mxu0 %v463
    %527 = vmatpush.msra.mxu0 %v462
    %528 = vmatpush.msra.mxu0 %v461
    %529 = vmatpush.msra.mxu0 %v460
    %530 = vmatpush.msra.mxu0 %v459
    %531 = vmatpush.msra.mxu0 %v458
    %532 = vmatpush.msra.mxu0 %v457
    %533 = vmatpush.msra.mxu0 %v456
    %534 = vmatpush.msra.mxu0 %v455
    %535 = vmatpush.msra.mxu0 %v454
    %536 = vmatpush.msra.mxu0 %v453
    %537 = vmatmul.f32.gmra.mxu0 %v206
    %v538 = vpop.f32.mrf.mxu0
    %v539 = vadd.f32 %v519, %v538
    %540 = vdwg.mxu0
    %541 = vmatpush.msra.mxu0 %v484
    %542 = vmatpush.msra.mxu0 %v483
    %543 = vmatpush.msra.mxu0 %v482
    %544 = vmatpush.msra.mxu0 %v481
    %545 = vmatpush.msra.mxu0 %v480
    %546 = vmatpush.msra.mxu0 %v479
    %547 = vmatpush.msra.mxu0 %v478
    %548 = vmatpush.msra.mxu0 %v477
    %549 = vmatpush.msra.mxu0 %v476
    %550 = vmatpush.msra.mxu0 %v475
    %551 = vmatpush.msra.mxu0 %v474
    %552 = vmatpush.msra.mxu0 %v473
    %553 = vmatpush.msra.mxu0 %v472
    %554 = vmatpush.msra.mxu0 %v471
    %555 = vmatpush.msra.mxu0 %v470
    %556 = vmatpush.msra.mxu0 %v469
    %557 = vmatmul.f32.gmra.mxu0 %v207
    %v558 = vpop.f32.mrf.mxu0
    %v559 = vadd.f32 %v539, %v558
    %560 = vdwg.mxu0
    %561 = vmatpush.msra.mxu0 %v500
    %562 = vmatpush.msra.mxu0 %v499
    %563 = vmatpush.msra.mxu0 %v498
    %564 = vmatpush.msra.mxu0 %v497
    %565 = vmatpush.msra.mxu0 %v496
    %566 = vmatpush.msra.mxu0 %v495
    %567 = vmatpush.msra.mxu0 %v494
    %568 = vmatpush.msra.mxu0 %v493
    %569 = vmatpush.msra.mxu0 %v492
    %570 = vmatpush.msra.mxu0 %v491
    %571 = vmatpush.msra.mxu0 %v490
    %572 = vmatpush.msra.mxu0 %v489
    %573 = vmatpush.msra.mxu0 %v488
    %574 = vmatpush.msra.mxu0 %v487
    %575 = vmatpush.msra.mxu0 %v486
    %576 = vmatpush.msra.mxu0 %v485
    %577 = vmatmul.f32.gmra.mxu0 %v208
    %v578 = vpop.f32.mrf.mxu0
    %v579 = vadd.f32 %v559, %v578
    %580 = vdwg.mxu0
    %v581 = vmul.f32 %v291, %v291
    %v582 = vmul.f32 %v435, %v435
    %v583 = vadd.f32 %v581, %v582
    %v584 = vrsqrt.pop %v583
    %v585 = vmul.f32 %v584, %v583
    %v586 = vmul.f32 %v585, %v584
    %v587 = vmul.f32 0.5, %v586
    %v588 = vsub.f32 1.5, %v587
    %v589 = vmul.f32 %v584, %v588
    %v590 = vmul.f32 %v583, %v589
    %vm591 = vcmp.eq.f32.partialorder %v583, inf
    %v592 = vsel %vm591, %v583, %v590
    %vm593 = vcmp.eq.f32.partialorder %v583, 0.0
    %v594 = vand.u32 %v583, 2147483648
    %v595 = vsel %vm593, %v594, %v592
    %v596 = vadd.f32 %v595, 1.0
    %v597 = vrcp.pop %v596
    %vm598 = vcmp.eq.f32.partialorder %v579, 1.0
    %v599 = vsel %vm598, 5.0, 1.0
    %v600 = vmul.f32 %v597, %v599
    %v601 = vld [vmem:[#allocation8] sm:$0xff]
    %v602 = vld [vmem:[#allocation8 + $0x8] sm:$0xff]
    %v603 = vld [vmem:[#allocation8 + $0x10] sm:$0xff]
    %v604 = vld [vmem:[#allocation8 + $0x18] sm:$0xff]
    %vm605 = vcmask 261120
    %v607 = vsel %vm605, %v600, 0
    %609 = vmatpush.msra.mxu0 0.0
    %610 = vmatpush.msra.mxu0 0.0
    %611 = vmatpush.msra.mxu0 0.0
    %612 = vmatpush.msra.mxu0 0.0
    %613 = vmatpush.msra.mxu0 0.0
    %614 = vmatpush.msra.mxu0 0.0
    %615 = vmatpush.msra.mxu0 0.0
    %616 = vmatpush.msra.mxu0 0.0
    %617 = vmatpush.msra.mxu0 0.0
    %618 = vmatpush.msra.mxu0 0.0
    %619 = vmatpush.msra.mxu0 0.0
    %620 = vmatpush.msra.mxu0 0.0
    %621 = vmatpush.msra.mxu0 %v604
    %622 = vmatpush.msra.mxu0 %v603
    %623 = vmatpush.msra.mxu0 %v602
    %624 = vmatpush.msra.mxu0 %v601
    %625 = vmatmul.f32.gmra.mxu0 %v607
    %v626 = vpop.f32.mrf.mxu0
    %v627 = vadd.f32 1e-10, %v626
    %628 = vdwg.mxu0
    %v629 = vrcp.pop %v627
    %v630 = vmul.f32 %v627, %v629
    %v631 = vsub.f32 1.0, %v630
    %v632 = vmul.f32 %v629, %v631
    %v633 = vadd.f32 %v629, %v632
    %vm634 = vweird.f32 %v627
    %vm635 = vweird.f32 %v629
    %vm636 = vmor %vm634, %vm635
    %v637 = vsel %vm636, %v629, %v633
    %v638 = vand.u32 2147483647, %v627
    %vm639 = vcmp.eq.f32.partialorder %v638, 8.507059e+37
    %v640 = vand.u32 %v627, 2147483648
    %v641 = vor.u32 1.1754944e-38, %v640
    %v642 = vsel %vm639, %v641, %v637
    %v643 = vmul.f32 %v600, %v642
    %v644 = vld [vmem:[#allocation10] sm:$0xff]
    %v645 = vld [vmem:[#allocation10 + $0x8] sm:$0xff]
    %v646 = vld [vmem:[#allocation10 + $0x10] sm:$0xff]
    %v647 = vld [vmem:[#allocation10 + $0x18] sm:$0xff]
    %v648 = vld [vmem:[#allocation10 + $0x20] sm:$0xff]
    %v649 = vld [vmem:[#allocation10 + $0x28] sm:$0xff]
    %v650 = vld [vmem:[#allocation10 + $0x30] sm:$0xff]
    %v651 = vld [vmem:[#allocation10 + $0x38] sm:$0xff]
    %v652 = vld [vmem:[#allocation10 + $0x40] sm:$0xff]
    %v653 = vld [vmem:[#allocation10 + $0x48] sm:$0xff]
    %v654 = vld [vmem:[#allocation10 + $0x50] sm:$0xff]
    %v655 = vld [vmem:[#allocation10 + $0x58] sm:$0xff]
    %v656 = vld [vmem:[#allocation10 + $0x60] sm:$0xff]
    %v657 = vld [vmem:[#allocation10 + $0x68] sm:$0xff]
    %v658 = vld [vmem:[#allocation10 + $0x70] sm:$0xff]
    %v659 = vld [vmem:[#allocation10 + $0x78] sm:$0xff]
    %v660 = vld [vmem:[#allocation10 + $0x80] sm:$0xff]
    %v661 = vld [vmem:[#allocation10 + $0x88] sm:$0xff]
    %v662 = vld [vmem:[#allocation10 + $0x90] sm:$0xff]
    %v663 = vld [vmem:[#allocation10 + $0x98] sm:$0xff]
    %v664 = vld [vmem:[#allocation10 + $0xa0] sm:$0xff]
    %v665 = vld [vmem:[#allocation10 + $0xa8] sm:$0xff]
    %v666 = vld [vmem:[#allocation10 + $0xb0] sm:$0xff]
    %v667 = vld [vmem:[#allocation10 + $0xb8] sm:$0xff]
    %v668 = vld [vmem:[#allocation10 + $0xc0] sm:$0xff]
    %v669 = vld [vmem:[#allocation10 + $0xc8] sm:$0xff]
    %v670 = vld [vmem:[#allocation10 + $0xd0] sm:$0xff]
    %v671 = vld [vmem:[#allocation10 + $0xd8] sm:$0xff]
    %v672 = vld [vmem:[#allocation10 + $0xe0] sm:$0xff]
    %v673 = vld [vmem:[#allocation10 + $0xe8] sm:$0xff]
    %v674 = vld [vmem:[#allocation10 + $0xf0] sm:$0xff]
    %v675 = vld [vmem:[#allocation10 + $0xf8] sm:$0xff]
    %v677 = vsel %vm605, %v643, 0
    %679 = vmatpush.msra.mxu0 0.0
    %680 = vmatpush.msra.mxu0 0.0
    %681 = vmatpush.msra.mxu0 0.0
    %682 = vmatpush.msra.mxu0 0.0
    %683 = vmatpush.msra.mxu0 0.0
    %684 = vmatpush.msra.mxu0 0.0
    %685 = vmatpush.msra.mxu0 0.0
    %686 = vmatpush.msra.mxu0 0.0
    %687 = vmatpush.msra.mxu0 0.0
    %688 = vmatpush.msra.mxu0 0.0
    %689 = vmatpush.msra.mxu0 0.0
    %690 = vmatpush.msra.mxu0 0.0
    %691 = vmatpush.msra.mxu0 %v668
    %692 = vmatpush.msra.mxu0 %v660
    %693 = vmatpush.msra.mxu0 %v652
    %694 = vmatpush.msra.mxu0 %v644
    %695 = vmatmul.f32.gmra.mxu0 %v677
    %v696 = vpop.f32.mrf.mxu0
    %v697 = vadd.f32 0.0, %v696
    %698 = vdwg.mxu0
    %699 = vmatpush.msra.mxu0 0.0
    %700 = vmatpush.msra.mxu0 0.0
    %701 = vmatpush.msra.mxu0 0.0
    %702 = vmatpush.msra.mxu0 0.0
    %703 = vmatpush.msra.mxu0 0.0
    %704 = vmatpush.msra.mxu0 0.0
    %705 = vmatpush.msra.mxu0 0.0
    %706 = vmatpush.msra.mxu0 0.0
    %707 = vmatpush.msra.mxu0 0.0
    %708 = vmatpush.msra.mxu0 0.0
    %709 = vmatpush.msra.mxu0 0.0
    %710 = vmatpush.msra.mxu0 0.0
    %711 = vmatpush.msra.mxu0 %v669
    %712 = vmatpush.msra.mxu0 %v661
    %713 = vmatpush.msra.mxu0 %v653
    %714 = vmatpush.msra.mxu0 %v645
    %715 = vmatmul.f32.gmra.mxu0 %v677
    %v716 = vpop.f32.mrf.mxu0
    %v717 = vadd.f32 0.0, %v716
    %718 = vdwg.mxu0
    %719 = vmatpush.msra.mxu0 0.0
    %720 = vmatpush.msra.mxu0 0.0
    %721 = vmatpush.msra.mxu0 0.0
    %722 = vmatpush.msra.mxu0 0.0
    %723 = vmatpush.msra.mxu0 0.0
    %724 = vmatpush.msra.mxu0 0.0
    %725 = vmatpush.msra.mxu0 0.0
    %726 = vmatpush.msra.mxu0 0.0
    %727 = vmatpush.msra.mxu0 0.0
    %728 = vmatpush.msra.mxu0 0.0
    %729 = vmatpush.msra.mxu0 0.0
    %730 = vmatpush.msra.mxu0 0.0
    %731 = vmatpush.msra.mxu0 %v670
    %732 = vmatpush.msra.mxu0 %v662
    %733 = vmatpush.msra.mxu0 %v654
    %734 = vmatpush.msra.mxu0 %v646
    %735 = vmatmul.f32.gmra.mxu0 %v677
    %v736 = vpop.f32.mrf.mxu0
    %v737 = vadd.f32 0.0, %v736
    %738 = vdwg.mxu0
    %739 = vmatpush.msra.mxu0 0.0
    %740 = vmatpush.msra.mxu0 0.0
    %741 = vmatpush.msra.mxu0 0.0
    %742 = vmatpush.msra.mxu0 0.0
    %743 = vmatpush.msra.mxu0 0.0
    %744 = vmatpush.msra.mxu0 0.0
    %745 = vmatpush.msra.mxu0 0.0
    %746 = vmatpush.msra.mxu0 0.0
    %747 = vmatpush.msra.mxu0 0.0
    %748 = vmatpush.msra.mxu0 0.0
    %749 = vmatpush.msra.mxu0 0.0
    %750 = vmatpush.msra.mxu0 0.0
    %751 = vmatpush.msra.mxu0 %v671
    %752 = vmatpush.msra.mxu0 %v663
    %753 = vmatpush.msra.mxu0 %v655
    %754 = vmatpush.msra.mxu0 %v647
    %755 = vmatmul.f32.gmra.mxu0 %v677
    %v756 = vpop.f32.mrf.mxu0
    %v757 = vadd.f32 0.0, %v756
    %758 = vdwg.mxu0
    %759 = vmatpush.msra.mxu0 0.0
    %760 = vmatpush.msra.mxu0 0.0
    %761 = vmatpush.msra.mxu0 0.0
    %762 = vmatpush.msra.mxu0 0.0
    %763 = vmatpush.msra.mxu0 0.0
    %764 = vmatpush.msra.mxu0 0.0
    %765 = vmatpush.msra.mxu0 0.0
    %766 = vmatpush.msra.mxu0 0.0
    %767 = vmatpush.msra.mxu0 0.0
    %768 = vmatpush.msra.mxu0 0.0
    %769 = vmatpush.msra.mxu0 0.0
    %770 = vmatpush.msra.mxu0 0.0
    %771 = vmatpush.msra.mxu0 %v672
    %772 = vmatpush.msra.mxu0 %v664
    %773 = vmatpush.msra.mxu0 %v656
    %774 = vmatpush.msra.mxu0 %v648
    %775 = vmatmul.f32.gmra.mxu0 %v677
    %v776 = vpop.f32.mrf.mxu0
    %v777 = vadd.f32 0.0, %v776
    %778 = vdwg.mxu0
    %779 = vmatpush.msra.mxu0 0.0
    %780 = vmatpush.msra.mxu0 0.0
    %781 = vmatpush.msra.mxu0 0.0
    %782 = vmatpush.msra.mxu0 0.0
    %783 = vmatpush.msra.mxu0 0.0
    %784 = vmatpush.msra.mxu0 0.0
    %785 = vmatpush.msra.mxu0 0.0
    %786 = vmatpush.msra.mxu0 0.0
    %787 = vmatpush.msra.mxu0 0.0
    %788 = vmatpush.msra.mxu0 0.0
    %789 = vmatpush.msra.mxu0 0.0
    %790 = vmatpush.msra.mxu0 0.0
    %791 = vmatpush.msra.mxu0 %v673
    %792 = vmatpush.msra.mxu0 %v665
    %793 = vmatpush.msra.mxu0 %v657
    %794 = vmatpush.msra.mxu0 %v649
    %795 = vmatmul.f32.gmra.mxu0 %v677
    %v796 = vpop.f32.mrf.mxu0
    %v797 = vadd.f32 0.0, %v796
    %798 = vdwg.mxu0
    %799 = vmatpush.msra.mxu0 0.0
    %800 = vmatpush.msra.mxu0 0.0
    %801 = vmatpush.msra.mxu0 0.0
    %802 = vmatpush.msra.mxu0 0.0
    %803 = vmatpush.msra.mxu0 0.0
    %804 = vmatpush.msra.mxu0 0.0
    %805 = vmatpush.msra.mxu0 0.0
    %806 = vmatpush.msra.mxu0 0.0
    %807 = vmatpush.msra.mxu0 0.0
    %808 = vmatpush.msra.mxu0 0.0
    %809 = vmatpush.msra.mxu0 0.0
    %810 = vmatpush.msra.mxu0 0.0
    %811 = vmatpush.msra.mxu0 %v674
    %812 = vmatpush.msra.mxu0 %v666
    %813 = vmatpush.msra.mxu0 %v658
    %814 = vmatpush.msra.mxu0 %v650
    %815 = vmatmul.f32.gmra.mxu0 %v677
    %v816 = vpop.f32.mrf.mxu0
    %v817 = vadd.f32 0.0, %v816
    %818 = vdwg.mxu0
    %819 = vmatpush.msra.mxu0 0.0
    %820 = vmatpush.msra.mxu0 0.0
    %821 = vmatpush.msra.mxu0 0.0
    %822 = vmatpush.msra.mxu0 0.0
    %823 = vmatpush.msra.mxu0 0.0
    %824 = vmatpush.msra.mxu0 0.0
    %825 = vmatpush.msra.mxu0 0.0
    %826 = vmatpush.msra.mxu0 0.0
    %827 = vmatpush.msra.mxu0 0.0
    %828 = vmatpush.msra.mxu0 0.0
    %829 = vmatpush.msra.mxu0 0.0
    %830 = vmatpush.msra.mxu0 0.0
    %831 = vmatpush.msra.mxu0 %v675
    %832 = vmatpush.msra.mxu0 %v667
    %833 = vmatpush.msra.mxu0 %v659
    %834 = vmatpush.msra.mxu0 %v651
    %835 = vmatmul.f32.gmra.mxu0 %v677
    %v836 = vpop.f32.mrf.mxu0
    %v837 = vadd.f32 0.0, %v836
    %838 = vdwg.mxu0
    %v839 = vld [vmem:[#allocation5] sm:$0xff]
    %v840 = vld [vmem:[#allocation5 + $0x8] sm:$0xff]
    %v841 = vld [vmem:[#allocation5 + $0x10] sm:$0xff]
    %v842 = vld [vmem:[#allocation5 + $0x18] sm:$0xff]
    %v843 = vld [vmem:[#allocation5 + $0x20] sm:$0xff]
    %v844 = vld [vmem:[#allocation5 + $0x28] sm:$0xff]
    %v845 = vld [vmem:[#allocation5 + $0x30] sm:$0xff]
    %v846 = vld [vmem:[#allocation5 + $0x38] sm:$0xff]
    %v847 = vld [vmem:[#allocation5 + $0x40] sm:$0xff]
    %v848 = vld [vmem:[#allocation5 + $0x48] sm:$0xff]
    %v849 = vld [vmem:[#allocation5 + $0x50] sm:$0xff]
    %v850 = vld [vmem:[#allocation5 + $0x58] sm:$0xff]
    %v851 = vld [vmem:[#allocation5 + $0x60] sm:$0xff]
    %v852 = vld [vmem:[#allocation5 + $0x68] sm:$0xff]
    %v853 = vld [vmem:[#allocation5 + $0x70] sm:$0xff]
    %v854 = vld [vmem:[#allocation5 + $0x78] sm:$0xff]
    %v855 = vld [vmem:[#allocation5 + $0x80] sm:$0xff]
    %v856 = vld [vmem:[#allocation5 + $0x88] sm:$0xff]
    %v857 = vld [vmem:[#allocation5 + $0x90] sm:$0xff]
    %v858 = vld [vmem:[#allocation5 + $0x98] sm:$0xff]
    %v859 = vld [vmem:[#allocation5 + $0xa0] sm:$0xff]
    %v860 = vld [vmem:[#allocation5 + $0xa8] sm:$0xff]
    %v861 = vld [vmem:[#allocation5 + $0xb0] sm:$0xff]
    %v862 = vld [vmem:[#allocation5 + $0xb8] sm:$0xff]
    %v863 = vld [vmem:[#allocation5 + $0xc0] sm:$0xff]
    %v864 = vld [vmem:[#allocation5 + $0xc8] sm:$0xff]
    %v865 = vld [vmem:[#allocation5 + $0xd0] sm:$0xff]
    %v866 = vld [vmem:[#allocation5 + $0xd8] sm:$0xff]
    %v867 = vld [vmem:[#allocation5 + $0xe0] sm:$0xff]
    %v868 = vld [vmem:[#allocation5 + $0xe8] sm:$0xff]
    %v869 = vld [vmem:[#allocation5 + $0xf0] sm:$0xff]
    %v870 = vld [vmem:[#allocation5 + $0xf8] sm:$0xff]
    %v871 = vld [vmem:[#allocation5 + $0x100] sm:$0xff]
    %v872 = vld [vmem:[#allocation5 + $0x108] sm:$0xff]
    %v873 = vld [vmem:[#allocation5 + $0x110] sm:$0xff]
    %v874 = vld [vmem:[#allocation5 + $0x118] sm:$0xff]
    %v875 = vld [vmem:[#allocation5 + $0x120] sm:$0xff]
    %v876 = vld [vmem:[#allocation5 + $0x128] sm:$0xff]
    %v877 = vld [vmem:[#allocation5 + $0x130] sm:$0xff]
    %v878 = vld [vmem:[#allocation5 + $0x138] sm:$0xff]
    %v879 = vld [vmem:[#allocation5 + $0x140] sm:$0xff]
    %v880 = vld [vmem:[#allocation5 + $0x148] sm:$0xff]
    %v881 = vld [vmem:[#allocation5 + $0x150] sm:$0xff]
    %v882 = vld [vmem:[#allocation5 + $0x158] sm:$0xff]
    %v883 = vld [vmem:[#allocation5 + $0x160] sm:$0xff]
    %v884 = vld [vmem:[#allocation5 + $0x168] sm:$0xff]
    %v885 = vld [vmem:[#allocation5 + $0x170] sm:$0xff]
    %v886 = vld [vmem:[#allocation5 + $0x178] sm:$0xff]
    %v887 = vld [vmem:[#allocation5 + $0x180] sm:$0xff]
    %v888 = vld [vmem:[#allocation5 + $0x188] sm:$0xff]
    %v889 = vld [vmem:[#allocation5 + $0x190] sm:$0xff]
    %v890 = vld [vmem:[#allocation5 + $0x198] sm:$0xff]
    %v891 = vld [vmem:[#allocation5 + $0x1a0] sm:$0xff]
    %v892 = vld [vmem:[#allocation5 + $0x1a8] sm:$0xff]
    %v893 = vld [vmem:[#allocation5 + $0x1b0] sm:$0xff]
    %v894 = vld [vmem:[#allocation5 + $0x1b8] sm:$0xff]
    %v895 = vld [vmem:[#allocation5 + $0x1c0] sm:$0xff]
    %v896 = vld [vmem:[#allocation5 + $0x1c8] sm:$0xff]
    %v897 = vld [vmem:[#allocation5 + $0x1d0] sm:$0xff]
    %v898 = vld [vmem:[#allocation5 + $0x1d8] sm:$0xff]
    %v899 = vld [vmem:[#allocation5 + $0x1e0] sm:$0xff]
    %v900 = vld [vmem:[#allocation5 + $0x1e8] sm:$0xff]
    %v901 = vld [vmem:[#allocation5 + $0x1f0] sm:$0xff]
    %v902 = vld [vmem:[#allocation5 + $0x1f8] sm:$0xff]
    %v903 = vld [vmem:[#allocation5 + $0x200] sm:$0xff]
    %v904 = vld [vmem:[#allocation5 + $0x208] sm:$0xff]
    %v905 = vld [vmem:[#allocation5 + $0x210] sm:$0xff]
    %v906 = vld [vmem:[#allocation5 + $0x218] sm:$0xff]
    %v907 = vld [vmem:[#allocation5 + $0x220] sm:$0xff]
    %v908 = vld [vmem:[#allocation5 + $0x228] sm:$0xff]
    %v909 = vld [vmem:[#allocation5 + $0x230] sm:$0xff]
    %v910 = vld [vmem:[#allocation5 + $0x238] sm:$0xff]
    %v911 = vld [vmem:[#allocation5 + $0x240] sm:$0xff]
    %v912 = vld [vmem:[#allocation5 + $0x248] sm:$0xff]
    %v913 = vld [vmem:[#allocation5 + $0x250] sm:$0xff]
    %v914 = vld [vmem:[#allocation5 + $0x258] sm:$0xff]
    %v915 = vld [vmem:[#allocation5 + $0x260] sm:$0xff]
    %v916 = vld [vmem:[#allocation5 + $0x268] sm:$0xff]
    %v917 = vld [vmem:[#allocation5 + $0x270] sm:$0xff]
    %v918 = vld [vmem:[#allocation5 + $0x278] sm:$0xff]
    %v919 = vld [vmem:[#allocation5 + $0x280] sm:$0xff]
    %v920 = vld [vmem:[#allocation5 + $0x288] sm:$0xff]
    %v921 = vld [vmem:[#allocation5 + $0x290] sm:$0xff]
    %v922 = vld [vmem:[#allocation5 + $0x298] sm:$0xff]
    %v923 = vld [vmem:[#allocation5 + $0x2a0] sm:$0xff]
    %v924 = vld [vmem:[#allocation5 + $0x2a8] sm:$0xff]
    %v925 = vld [vmem:[#allocation5 + $0x2b0] sm:$0xff]
    %v926 = vld [vmem:[#allocation5 + $0x2b8] sm:$0xff]
    %v927 = vld [vmem:[#allocation5 + $0x2c0] sm:$0xff]
    %v928 = vld [vmem:[#allocation5 + $0x2c8] sm:$0xff]
    %v929 = vld [vmem:[#allocation5 + $0x2d0] sm:$0xff]
    %v930 = vld [vmem:[#allocation5 + $0x2d8] sm:$0xff]
    %v931 = vld [vmem:[#allocation5 + $0x2e0] sm:$0xff]
    %v932 = vld [vmem:[#allocation5 + $0x2e8] sm:$0xff]
    %v933 = vld [vmem:[#allocation5 + $0x2f0] sm:$0xff]
    %v934 = vld [vmem:[#allocation5 + $0x2f8] sm:$0xff]
    %v935 = vld [vmem:[#allocation5 + $0x300] sm:$0xff]
    %v936 = vld [vmem:[#allocation5 + $0x308] sm:$0xff]
    %v937 = vld [vmem:[#allocation5 + $0x310] sm:$0xff]
    %v938 = vld [vmem:[#allocation5 + $0x318] sm:$0xff]
    %v939 = vld [vmem:[#allocation5 + $0x320] sm:$0xff]
    %v940 = vld [vmem:[#allocation5 + $0x328] sm:$0xff]
    %v941 = vld [vmem:[#allocation5 + $0x330] sm:$0xff]
    %v942 = vld [vmem:[#allocation5 + $0x338] sm:$0xff]
    %v943 = vld [vmem:[#allocation5 + $0x340] sm:$0xff]
    %v944 = vld [vmem:[#allocation5 + $0x348] sm:$0xff]
    %v945 = vld [vmem:[#allocation5 + $0x350] sm:$0xff]
    %v946 = vld [vmem:[#allocation5 + $0x358] sm:$0xff]
    %v947 = vld [vmem:[#allocation5 + $0x360] sm:$0xff]
    %v948 = vld [vmem:[#allocation5 + $0x368] sm:$0xff]
    %v949 = vld [vmem:[#allocation5 + $0x370] sm:$0xff]
    %v950 = vld [vmem:[#allocation5 + $0x378] sm:$0xff]
    %v951 = vld [vmem:[#allocation5 + $0x380] sm:$0xff]
    %v952 = vld [vmem:[#allocation5 + $0x388] sm:$0xff]
    %v953 = vld [vmem:[#allocation5 + $0x390] sm:$0xff]
    %v954 = vld [vmem:[#allocation5 + $0x398] sm:$0xff]
    %v955 = vld [vmem:[#allocation5 + $0x3a0] sm:$0xff]
    %v956 = vld [vmem:[#allocation5 + $0x3a8] sm:$0xff]
    %v957 = vld [vmem:[#allocation5 + $0x3b0] sm:$0xff]
    %v958 = vld [vmem:[#allocation5 + $0x3b8] sm:$0xff]
    %v959 = vld [vmem:[#allocation5 + $0x3c0] sm:$0xff]
    %v960 = vld [vmem:[#allocation5 + $0x3c8] sm:$0xff]
    %v961 = vld [vmem:[#allocation5 + $0x3d0] sm:$0xff]
    %v962 = vld [vmem:[#allocation5 + $0x3d8] sm:$0xff]
    %v963 = vld [vmem:[#allocation5 + $0x3e0] sm:$0xff]
    %v964 = vld [vmem:[#allocation5 + $0x3e8] sm:$0xff]
    %v965 = vld [vmem:[#allocation5 + $0x3f0] sm:$0xff]
    %v966 = vld [vmem:[#allocation5 + $0x3f8] sm:$0xff]
    %v967 = vld [vmem:[#allocation5 + $0x400] sm:$0xff]
    %v968 = vld [vmem:[#allocation5 + $0x408] sm:$0xff]
    %v969 = vld [vmem:[#allocation5 + $0x410] sm:$0xff]
    %v970 = vld [vmem:[#allocation5 + $0x418] sm:$0xff]
    %v971 = vld [vmem:[#allocation5 + $0x420] sm:$0xff]
    %v972 = vld [vmem:[#allocation5 + $0x428] sm:$0xff]
    %v973 = vld [vmem:[#allocation5 + $0x430] sm:$0xff]
    %v974 = vld [vmem:[#allocation5 + $0x438] sm:$0xff]
    %v975 = vld [vmem:[#allocation5 + $0x440] sm:$0xff]
    %v976 = vld [vmem:[#allocation5 + $0x448] sm:$0xff]
    %v977 = vld [vmem:[#allocation5 + $0x450] sm:$0xff]
    %v978 = vld [vmem:[#allocation5 + $0x458] sm:$0xff]
    %v979 = vld [vmem:[#allocation5 + $0x460] sm:$0xff]
    %v980 = vld [vmem:[#allocation5 + $0x468] sm:$0xff]
    %v981 = vld [vmem:[#allocation5 + $0x470] sm:$0xff]
    %v982 = vld [vmem:[#allocation5 + $0x478] sm:$0xff]
    %v983 = vld [vmem:[#allocation5 + $0x480] sm:$0xff]
    %v984 = vld [vmem:[#allocation5 + $0x488] sm:$0xff]
    %v985 = vld [vmem:[#allocation5 + $0x490] sm:$0xff]
    %v986 = vld [vmem:[#allocation5 + $0x498] sm:$0xff]
    %v987 = vld [vmem:[#allocation5 + $0x4a0] sm:$0xff]
    %v988 = vld [vmem:[#allocation5 + $0x4a8] sm:$0xff]
    %v989 = vld [vmem:[#allocation5 + $0x4b0] sm:$0xff]
    %v990 = vld [vmem:[#allocation5 + $0x4b8] sm:$0xff]
    %v991 = vld [vmem:[#allocation5 + $0x4c0] sm:$0xff]
    %v992 = vld [vmem:[#allocation5 + $0x4c8] sm:$0xff]
    %v993 = vld [vmem:[#allocation5 + $0x4d0] sm:$0xff]
    %v994 = vld [vmem:[#allocation5 + $0x4d8] sm:$0xff]
    %v995 = vld [vmem:[#allocation5 + $0x4e0] sm:$0xff]
    %v996 = vld [vmem:[#allocation5 + $0x4e8] sm:$0xff]
    %v997 = vld [vmem:[#allocation5 + $0x4f0] sm:$0xff]
    %v998 = vld [vmem:[#allocation5 + $0x4f8] sm:$0xff]
    %v999 = vld [vmem:[#allocation5 + $0x500] sm:$0xff]
    %v1000 = vld [vmem:[#allocation5 + $0x508] sm:$0xff]
    %v1001 = vld [vmem:[#allocation5 + $0x510] sm:$0xff]
    %v1002 = vld [vmem:[#allocation5 + $0x518] sm:$0xff]
    %v1003 = vld [vmem:[#allocation5 + $0x520] sm:$0xff]
    %v1004 = vld [vmem:[#allocation5 + $0x528] sm:$0xff]
    %v1005 = vld [vmem:[#allocation5 + $0x530] sm:$0xff]
    %v1006 = vld [vmem:[#allocation5 + $0x538] sm:$0xff]
    %v1007 = vld [vmem:[#allocation5 + $0x540] sm:$0xff]
    %v1008 = vld [vmem:[#allocation5 + $0x548] sm:$0xff]
    %v1009 = vld [vmem:[#allocation5 + $0x550] sm:$0xff]
    %v1010 = vld [vmem:[#allocation5 + $0x558] sm:$0xff]
    %v1011 = vld [vmem:[#allocation5 + $0x560] sm:$0xff]
    %v1012 = vld [vmem:[#allocation5 + $0x568] sm:$0xff]
    %v1013 = vld [vmem:[#allocation5 + $0x570] sm:$0xff]
    %v1014 = vld [vmem:[#allocation5 + $0x578] sm:$0xff]
    %v1015 = vld [vmem:[#allocation5 + $0x580] sm:$0xff]
    %v1016 = vld [vmem:[#allocation5 + $0x588] sm:$0xff]
    %v1017 = vld [vmem:[#allocation5 + $0x590] sm:$0xff]
    %v1018 = vld [vmem:[#allocation5 + $0x598] sm:$0xff]
    %v1019 = vld [vmem:[#allocation5 + $0x5a0] sm:$0xff]
    %v1020 = vld [vmem:[#allocation5 + $0x5a8] sm:$0xff]
    %v1021 = vld [vmem:[#allocation5 + $0x5b0] sm:$0xff]
    %v1022 = vld [vmem:[#allocation5 + $0x5b8] sm:$0xff]
    %v1023 = vld [vmem:[#allocation5 + $0x5c0] sm:$0xff]
    %v1024 = vld [vmem:[#allocation5 + $0x5c8] sm:$0xff]
    %v1025 = vld [vmem:[#allocation5 + $0x5d0] sm:$0xff]
    %v1026 = vld [vmem:[#allocation5 + $0x5d8] sm:$0xff]
    %v1027 = vld [vmem:[#allocation5 + $0x5e0] sm:$0xff]
    %v1028 = vld [vmem:[#allocation5 + $0x5e8] sm:$0xff]
    %v1029 = vld [vmem:[#allocation5 + $0x5f0] sm:$0xff]
    %v1030 = vld [vmem:[#allocation5 + $0x5f8] sm:$0xff]
    %v1031 = vld [vmem:[#allocation5 + $0x600] sm:$0xff]
    %v1032 = vld [vmem:[#allocation5 + $0x608] sm:$0xff]
    %v1033 = vld [vmem:[#allocation5 + $0x610] sm:$0xff]
    %v1034 = vld [vmem:[#allocation5 + $0x618] sm:$0xff]
    %v1035 = vld [vmem:[#allocation5 + $0x620] sm:$0xff]
    %v1036 = vld [vmem:[#allocation5 + $0x628] sm:$0xff]
    %v1037 = vld [vmem:[#allocation5 + $0x630] sm:$0xff]
    %v1038 = vld [vmem:[#allocation5 + $0x638] sm:$0xff]
    %v1039 = vld [vmem:[#allocation5 + $0x640] sm:$0xff]
    %v1040 = vld [vmem:[#allocation5 + $0x648] sm:$0xff]
    %v1041 = vld [vmem:[#allocation5 + $0x650] sm:$0xff]
    %v1042 = vld [vmem:[#allocation5 + $0x658] sm:$0xff]
    %v1043 = vld [vmem:[#allocation5 + $0x660] sm:$0xff]
    %v1044 = vld [vmem:[#allocation5 + $0x668] sm:$0xff]
    %v1045 = vld [vmem:[#allocation5 + $0x670] sm:$0xff]
    %v1046 = vld [vmem:[#allocation5 + $0x678] sm:$0xff]
    %v1047 = vld [vmem:[#allocation5 + $0x680] sm:$0xff]
    %v1048 = vld [vmem:[#allocation5 + $0x688] sm:$0xff]
    %v1049 = vld [vmem:[#allocation5 + $0x690] sm:$0xff]
    %v1050 = vld [vmem:[#allocation5 + $0x698] sm:$0xff]
    %v1051 = vld [vmem:[#allocation5 + $0x6a0] sm:$0xff]
    %v1052 = vld [vmem:[#allocation5 + $0x6a8] sm:$0xff]
    %v1053 = vld [vmem:[#allocation5 + $0x6b0] sm:$0xff]
    %v1054 = vld [vmem:[#allocation5 + $0x6b8] sm:$0xff]
    %v1055 = vld [vmem:[#allocation5 + $0x6c0] sm:$0xff]
    %v1056 = vld [vmem:[#allocation5 + $0x6c8] sm:$0xff]
    %v1057 = vld [vmem:[#allocation5 + $0x6d0] sm:$0xff]
    %v1058 = vld [vmem:[#allocation5 + $0x6d8] sm:$0xff]
    %v1059 = vld [vmem:[#allocation5 + $0x6e0] sm:$0xff]
    %v1060 = vld [vmem:[#allocation5 + $0x6e8] sm:$0xff]
    %v1061 = vld [vmem:[#allocation5 + $0x6f0] sm:$0xff]
    %v1062 = vld [vmem:[#allocation5 + $0x6f8] sm:$0xff]
    %v1063 = vld [vmem:[#allocation5 + $0x700] sm:$0xff]
    %v1064 = vld [vmem:[#allocation5 + $0x708] sm:$0xff]
    %v1065 = vld [vmem:[#allocation5 + $0x710] sm:$0xff]
    %v1066 = vld [vmem:[#allocation5 + $0x718] sm:$0xff]
    %v1067 = vld [vmem:[#allocation5 + $0x720] sm:$0xff]
    %v1068 = vld [vmem:[#allocation5 + $0x728] sm:$0xff]
    %v1069 = vld [vmem:[#allocation5 + $0x730] sm:$0xff]
    %v1070 = vld [vmem:[#allocation5 + $0x738] sm:$0xff]
    %v1071 = vld [vmem:[#allocation5 + $0x740] sm:$0xff]
    %v1072 = vld [vmem:[#allocation5 + $0x748] sm:$0xff]
    %v1073 = vld [vmem:[#allocation5 + $0x750] sm:$0xff]
    %v1074 = vld [vmem:[#allocation5 + $0x758] sm:$0xff]
    %v1075 = vld [vmem:[#allocation5 + $0x760] sm:$0xff]
    %v1076 = vld [vmem:[#allocation5 + $0x768] sm:$0xff]
    %v1077 = vld [vmem:[#allocation5 + $0x770] sm:$0xff]
    %v1078 = vld [vmem:[#allocation5 + $0x778] sm:$0xff]
    %v1079 = vld [vmem:[#allocation5 + $0x780] sm:$0xff]
    %v1080 = vld [vmem:[#allocation5 + $0x788] sm:$0xff]
    %v1081 = vld [vmem:[#allocation5 + $0x790] sm:$0xff]
    %v1082 = vld [vmem:[#allocation5 + $0x798] sm:$0xff]
    %v1083 = vld [vmem:[#allocation5 + $0x7a0] sm:$0xff]
    %v1084 = vld [vmem:[#allocation5 + $0x7a8] sm:$0xff]
    %v1085 = vld [vmem:[#allocation5 + $0x7b0] sm:$0xff]
    %v1086 = vld [vmem:[#allocation5 + $0x7b8] sm:$0xff]
    %v1087 = vld [vmem:[#allocation5 + $0x7c0] sm:$0xff]
    %v1088 = vld [vmem:[#allocation5 + $0x7c8] sm:$0xff]
    %v1089 = vld [vmem:[#allocation5 + $0x7d0] sm:$0xff]
    %v1090 = vld [vmem:[#allocation5 + $0x7d8] sm:$0xff]
    %v1091 = vld [vmem:[#allocation5 + $0x7e0] sm:$0xff]
    %v1092 = vld [vmem:[#allocation5 + $0x7e8] sm:$0xff]
    %v1093 = vld [vmem:[#allocation5 + $0x7f0] sm:$0xff]
    %v1094 = vld [vmem:[#allocation5 + $0x7f8] sm:$0xff]
    %v1095 = vld [vmem:[#allocation5 + $0x800] sm:$0xff]
    %v1096 = vld [vmem:[#allocation5 + $0x808] sm:$0xff]
    %v1097 = vld [vmem:[#allocation5 + $0x810] sm:$0xff]
    %v1098 = vld [vmem:[#allocation5 + $0x818] sm:$0xff]
    %v1099 = vld [vmem:[#allocation5 + $0x820] sm:$0xff]
    %v1100 = vld [vmem:[#allocation5 + $0x828] sm:$0xff]
    %v1101 = vld [vmem:[#allocation5 + $0x830] sm:$0xff]
    %v1102 = vld [vmem:[#allocation5 + $0x838] sm:$0xff]
    %v1103 = vld [vmem:[#allocation5 + $0x840] sm:$0xff]
    %v1104 = vld [vmem:[#allocation5 + $0x848] sm:$0xff]
    %v1105 = vld [vmem:[#allocation5 + $0x850] sm:$0xff]
    %v1106 = vld [vmem:[#allocation5 + $0x858] sm:$0xff]
    %v1107 = vld [vmem:[#allocation5 + $0x860] sm:$0xff]
    %v1108 = vld [vmem:[#allocation5 + $0x868] sm:$0xff]
    %v1109 = vld [vmem:[#allocation5 + $0x870] sm:$0xff]
    %v1110 = vld [vmem:[#allocation5 + $0x878] sm:$0xff]
    %v1111 = vld [vmem:[#allocation5 + $0x880] sm:$0xff]
    %v1112 = vld [vmem:[#allocation5 + $0x888] sm:$0xff]
    %v1113 = vld [vmem:[#allocation5 + $0x890] sm:$0xff]
    %v1114 = vld [vmem:[#allocation5 + $0x898] sm:$0xff]
    %v1115 = vld [vmem:[#allocation5 + $0x8a0] sm:$0xff]
    %v1116 = vld [vmem:[#allocation5 + $0x8a8] sm:$0xff]
    %v1117 = vld [vmem:[#allocation5 + $0x8b0] sm:$0xff]
    %v1118 = vld [vmem:[#allocation5 + $0x8b8] sm:$0xff]
    %v1119 = vld [vmem:[#allocation5 + $0x8c0] sm:$0xff]
    %v1120 = vld [vmem:[#allocation5 + $0x8c8] sm:$0xff]
    %v1121 = vld [vmem:[#allocation5 + $0x8d0] sm:$0xff]
    %v1122 = vld [vmem:[#allocation5 + $0x8d8] sm:$0xff]
    %v1123 = vld [vmem:[#allocation5 + $0x8e0] sm:$0xff]
    %v1124 = vld [vmem:[#allocation5 + $0x8e8] sm:$0xff]
    %v1125 = vld [vmem:[#allocation5 + $0x8f0] sm:$0xff]
    %v1126 = vld [vmem:[#allocation5 + $0x8f8] sm:$0xff]
    %v1127 = vld [vmem:[#allocation5 + $0x900] sm:$0xff]
    %v1128 = vld [vmem:[#allocation5 + $0x908] sm:$0xff]
    %v1129 = vld [vmem:[#allocation5 + $0x910] sm:$0xff]
    %v1130 = vld [vmem:[#allocation5 + $0x918] sm:$0xff]
    %v1131 = vld [vmem:[#allocation5 + $0x920] sm:$0xff]
    %v1132 = vld [vmem:[#allocation5 + $0x928] sm:$0xff]
    %v1133 = vld [vmem:[#allocation5 + $0x930] sm:$0xff]
    %v1134 = vld [vmem:[#allocation5 + $0x938] sm:$0xff]
    %v1135 = vld [vmem:[#allocation5 + $0x940] sm:$0xff]
    %v1136 = vld [vmem:[#allocation5 + $0x948] sm:$0xff]
    %v1137 = vld [vmem:[#allocation5 + $0x950] sm:$0xff]
    %v1138 = vld [vmem:[#allocation5 + $0x958] sm:$0xff]
    %v1139 = vld [vmem:[#allocation5 + $0x960] sm:$0xff]
    %v1140 = vld [vmem:[#allocation5 + $0x968] sm:$0xff]
    %v1141 = vld [vmem:[#allocation5 + $0x970] sm:$0xff]
    %v1142 = vld [vmem:[#allocation5 + $0x978] sm:$0xff]
    %v1143 = vld [vmem:[#allocation5 + $0x980] sm:$0xff]
    %v1144 = vld [vmem:[#allocation5 + $0x988] sm:$0xff]
    %v1145 = vld [vmem:[#allocation5 + $0x990] sm:$0xff]
    %v1146 = vld [vmem:[#allocation5 + $0x998] sm:$0xff]
    %v1147 = vld [vmem:[#allocation5 + $0x9a0] sm:$0xff]
    %v1148 = vld [vmem:[#allocation5 + $0x9a8] sm:$0xff]
    %v1149 = vld [vmem:[#allocation5 + $0x9b0] sm:$0xff]
    %v1150 = vld [vmem:[#allocation5 + $0x9b8] sm:$0xff]
    %v1151 = vld [vmem:[#allocation5 + $0x9c0] sm:$0xff]
    %v1152 = vld [vmem:[#allocation5 + $0x9c8] sm:$0xff]
    %v1153 = vld [vmem:[#allocation5 + $0x9d0] sm:$0xff]
    %v1154 = vld [vmem:[#allocation5 + $0x9d8] sm:$0xff]
    %v1155 = vld [vmem:[#allocation5 + $0x9e0] sm:$0xff]
    %v1156 = vld [vmem:[#allocation5 + $0x9e8] sm:$0xff]
    %v1157 = vld [vmem:[#allocation5 + $0x9f0] sm:$0xff]
    %v1158 = vld [vmem:[#allocation5 + $0x9f8] sm:$0xff]
    %v1159 = vld [vmem:[#allocation5 + $0xa00] sm:$0xff]
    %v1160 = vld [vmem:[#allocation5 + $0xa08] sm:$0xff]
    %v1161 = vld [vmem:[#allocation5 + $0xa10] sm:$0xff]
    %v1162 = vld [vmem:[#allocation5 + $0xa18] sm:$0xff]
    %v1163 = vld [vmem:[#allocation5 + $0xa20] sm:$0xff]
    %v1164 = vld [vmem:[#allocation5 + $0xa28] sm:$0xff]
    %v1165 = vld [vmem:[#allocation5 + $0xa30] sm:$0xff]
    %v1166 = vld [vmem:[#allocation5 + $0xa38] sm:$0xff]
    %v1167 = vld [vmem:[#allocation5 + $0xa40] sm:$0xff]
    %v1168 = vld [vmem:[#allocation5 + $0xa48] sm:$0xff]
    %v1169 = vld [vmem:[#allocation5 + $0xa50] sm:$0xff]
    %v1170 = vld [vmem:[#allocation5 + $0xa58] sm:$0xff]
    %v1171 = vld [vmem:[#allocation5 + $0xa60] sm:$0xff]
    %v1172 = vld [vmem:[#allocation5 + $0xa68] sm:$0xff]
    %v1173 = vld [vmem:[#allocation5 + $0xa70] sm:$0xff]
    %v1174 = vld [vmem:[#allocation5 + $0xa78] sm:$0xff]
    %v1175 = vld [vmem:[#allocation5 + $0xa80] sm:$0xff]
    %v1176 = vld [vmem:[#allocation5 + $0xa88] sm:$0xff]
    %v1177 = vld [vmem:[#allocation5 + $0xa90] sm:$0xff]
    %v1178 = vld [vmem:[#allocation5 + $0xa98] sm:$0xff]
    %v1179 = vld [vmem:[#allocation5 + $0xaa0] sm:$0xff]
    %v1180 = vld [vmem:[#allocation5 + $0xaa8] sm:$0xff]
    %v1181 = vld [vmem:[#allocation5 + $0xab0] sm:$0xff]
    %v1182 = vld [vmem:[#allocation5 + $0xab8] sm:$0xff]
    %v1183 = vld [vmem:[#allocation5 + $0xac0] sm:$0xff]
    %v1184 = vld [vmem:[#allocation5 + $0xac8] sm:$0xff]
    %v1185 = vld [vmem:[#allocation5 + $0xad0] sm:$0xff]
    %v1186 = vld [vmem:[#allocation5 + $0xad8] sm:$0xff]
    %v1187 = vld [vmem:[#allocation5 + $0xae0] sm:$0xff]
    %v1188 = vld [vmem:[#allocation5 + $0xae8] sm:$0xff]
    %v1189 = vld [vmem:[#allocation5 + $0xaf0] sm:$0xff]
    %v1190 = vld [vmem:[#allocation5 + $0xaf8] sm:$0xff]
    %v1191 = vld [vmem:[#allocation5 + $0xb00] sm:$0xff]
    %v1192 = vld [vmem:[#allocation5 + $0xb08] sm:$0xff]
    %v1193 = vld [vmem:[#allocation5 + $0xb10] sm:$0xff]
    %v1194 = vld [vmem:[#allocation5 + $0xb18] sm:$0xff]
    %v1195 = vld [vmem:[#allocation5 + $0xb20] sm:$0xff]
    %v1196 = vld [vmem:[#allocation5 + $0xb28] sm:$0xff]
    %v1197 = vld [vmem:[#allocation5 + $0xb30] sm:$0xff]
    %v1198 = vld [vmem:[#allocation5 + $0xb38] sm:$0xff]
    %v1199 = vld [vmem:[#allocation5 + $0xb40] sm:$0xff]
    %v1200 = vld [vmem:[#allocation5 + $0xb48] sm:$0xff]
    %v1201 = vld [vmem:[#allocation5 + $0xb50] sm:$0xff]
    %v1202 = vld [vmem:[#allocation5 + $0xb58] sm:$0xff]
    %v1203 = vld [vmem:[#allocation5 + $0xb60] sm:$0xff]
    %v1204 = vld [vmem:[#allocation5 + $0xb68] sm:$0xff]
    %v1205 = vld [vmem:[#allocation5 + $0xb70] sm:$0xff]
    %v1206 = vld [vmem:[#allocation5 + $0xb78] sm:$0xff]
    %v1207 = vld [vmem:[#allocation5 + $0xb80] sm:$0xff]
    %v1208 = vld [vmem:[#allocation5 + $0xb88] sm:$0xff]
    %v1209 = vld [vmem:[#allocation5 + $0xb90] sm:$0xff]
    %v1210 = vld [vmem:[#allocation5 + $0xb98] sm:$0xff]
    %v1211 = vld [vmem:[#allocation5 + $0xba0] sm:$0xff]
    %v1212 = vld [vmem:[#allocation5 + $0xba8] sm:$0xff]
    %v1213 = vld [vmem:[#allocation5 + $0xbb0] sm:$0xff]
    %v1214 = vld [vmem:[#allocation5 + $0xbb8] sm:$0xff]
    %v1215 = vld [vmem:[#allocation5 + $0xbc0] sm:$0xff]
    %v1216 = vld [vmem:[#allocation5 + $0xbc8] sm:$0xff]
    %v1217 = vld [vmem:[#allocation5 + $0xbd0] sm:$0xff]
    %v1218 = vld [vmem:[#allocation5 + $0xbd8] sm:$0xff]
    %v1219 = vld [vmem:[#allocation5 + $0xbe0] sm:$0xff]
    %v1220 = vld [vmem:[#allocation5 + $0xbe8] sm:$0xff]
    %v1221 = vld [vmem:[#allocation5 + $0xbf0] sm:$0xff]
    %v1222 = vld [vmem:[#allocation5 + $0xbf8] sm:$0xff]
    %v1223 = vld [vmem:[#allocation5 + $0xc00] sm:$0xff]
    %v1224 = vld [vmem:[#allocation5 + $0xc08] sm:$0xff]
    %v1225 = vld [vmem:[#allocation5 + $0xc10] sm:$0xff]
    %v1226 = vld [vmem:[#allocation5 + $0xc18] sm:$0xff]
    %v1227 = vld [vmem:[#allocation5 + $0xc20] sm:$0xff]
    %v1228 = vld [vmem:[#allocation5 + $0xc28] sm:$0xff]
    %v1229 = vld [vmem:[#allocation5 + $0xc30] sm:$0xff]
    %v1230 = vld [vmem:[#allocation5 + $0xc38] sm:$0xff]
    %v1231 = vld [vmem:[#allocation5 + $0xc40] sm:$0xff]
    %v1232 = vld [vmem:[#allocation5 + $0xc48] sm:$0xff]
    %v1233 = vld [vmem:[#allocation5 + $0xc50] sm:$0xff]
    %v1234 = vld [vmem:[#allocation5 + $0xc58] sm:$0xff]
    %v1235 = vld [vmem:[#allocation5 + $0xc60] sm:$0xff]
    %v1236 = vld [vmem:[#allocation5 + $0xc68] sm:$0xff]
    %v1237 = vld [vmem:[#allocation5 + $0xc70] sm:$0xff]
    %v1238 = vld [vmem:[#allocation5 + $0xc78] sm:$0xff]
    %v1239 = vld [vmem:[#allocation5 + $0xc80] sm:$0xff]
    %v1240 = vld [vmem:[#allocation5 + $0xc88] sm:$0xff]
    %v1241 = vld [vmem:[#allocation5 + $0xc90] sm:$0xff]
    %v1242 = vld [vmem:[#allocation5 + $0xc98] sm:$0xff]
    %v1243 = vld [vmem:[#allocation5 + $0xca0] sm:$0xff]
    %v1244 = vld [vmem:[#allocation5 + $0xca8] sm:$0xff]
    %v1245 = vld [vmem:[#allocation5 + $0xcb0] sm:$0xff]
    %v1246 = vld [vmem:[#allocation5 + $0xcb8] sm:$0xff]
    %v1247 = vld [vmem:[#allocation5 + $0xcc0] sm:$0xff]
    %v1248 = vld [vmem:[#allocation5 + $0xcc8] sm:$0xff]
    %v1249 = vld [vmem:[#allocation5 + $0xcd0] sm:$0xff]
    %v1250 = vld [vmem:[#allocation5 + $0xcd8] sm:$0xff]
    %v1251 = vld [vmem:[#allocation5 + $0xce0] sm:$0xff]
    %v1252 = vld [vmem:[#allocation5 + $0xce8] sm:$0xff]
    %v1253 = vld [vmem:[#allocation5 + $0xcf0] sm:$0xff]
    %v1254 = vld [vmem:[#allocation5 + $0xcf8] sm:$0xff]
    %v1255 = vld [vmem:[#allocation5 + $0xd00] sm:$0xff]
    %v1256 = vld [vmem:[#allocation5 + $0xd08] sm:$0xff]
    %v1257 = vld [vmem:[#allocation5 + $0xd10] sm:$0xff]
    %v1258 = vld [vmem:[#allocation5 + $0xd18] sm:$0xff]
    %v1259 = vld [vmem:[#allocation5 + $0xd20] sm:$0xff]
    %v1260 = vld [vmem:[#allocation5 + $0xd28] sm:$0xff]
    %v1261 = vld [vmem:[#allocation5 + $0xd30] sm:$0xff]
    %v1262 = vld [vmem:[#allocation5 + $0xd38] sm:$0xff]
    %v1263 = vld [vmem:[#allocation5 + $0xd40] sm:$0xff]
    %v1264 = vld [vmem:[#allocation5 + $0xd48] sm:$0xff]
    %v1265 = vld [vmem:[#allocation5 + $0xd50] sm:$0xff]
    %v1266 = vld [vmem:[#allocation5 + $0xd58] sm:$0xff]
    %v1267 = vld [vmem:[#allocation5 + $0xd60] sm:$0xff]
    %v1268 = vld [vmem:[#allocation5 + $0xd68] sm:$0xff]
    %v1269 = vld [vmem:[#allocation5 + $0xd70] sm:$0xff]
    %v1270 = vld [vmem:[#allocation5 + $0xd78] sm:$0xff]
    %v1271 = vld [vmem:[#allocation5 + $0xd80] sm:$0xff]
    %v1272 = vld [vmem:[#allocation5 + $0xd88] sm:$0xff]
    %v1273 = vld [vmem:[#allocation5 + $0xd90] sm:$0xff]
    %v1274 = vld [vmem:[#allocation5 + $0xd98] sm:$0xff]
    %v1275 = vld [vmem:[#allocation5 + $0xda0] sm:$0xff]
    %v1276 = vld [vmem:[#allocation5 + $0xda8] sm:$0xff]
    %v1277 = vld [vmem:[#allocation5 + $0xdb0] sm:$0xff]
    %v1278 = vld [vmem:[#allocation5 + $0xdb8] sm:$0xff]
    %v1279 = vld [vmem:[#allocation5 + $0xdc0] sm:$0xff]
    %v1280 = vld [vmem:[#allocation5 + $0xdc8] sm:$0xff]
    %v1281 = vld [vmem:[#allocation5 + $0xdd0] sm:$0xff]
    %v1282 = vld [vmem:[#allocation5 + $0xdd8] sm:$0xff]
    %v1283 = vld [vmem:[#allocation5 + $0xde0] sm:$0xff]
    %v1284 = vld [vmem:[#allocation5 + $0xde8] sm:$0xff]
    %v1285 = vld [vmem:[#allocation5 + $0xdf0] sm:$0xff]
    %v1286 = vld [vmem:[#allocation5 + $0xdf8] sm:$0xff]
    %v1287 = vld [vmem:[#allocation5 + $0xe00] sm:$0xff]
    %v1288 = vld [vmem:[#allocation5 + $0xe08] sm:$0xff]
    %v1289 = vld [vmem:[#allocation5 + $0xe10] sm:$0xff]
    %v1290 = vld [vmem:[#allocation5 + $0xe18] sm:$0xff]
    %v1291 = vld [vmem:[#allocation5 + $0xe20] sm:$0xff]
    %v1292 = vld [vmem:[#allocation5 + $0xe28] sm:$0xff]
    %v1293 = vld [vmem:[#allocation5 + $0xe30] sm:$0xff]
    %v1294 = vld [vmem:[#allocation5 + $0xe38] sm:$0xff]
    %v1295 = vld [vmem:[#allocation5 + $0xe40] sm:$0xff]
    %v1296 = vld [vmem:[#allocation5 + $0xe48] sm:$0xff]
    %v1297 = vld [vmem:[#allocation5 + $0xe50] sm:$0xff]
    %v1298 = vld [vmem:[#allocation5 + $0xe58] sm:$0xff]
    %v1299 = vld [vmem:[#allocation5 + $0xe60] sm:$0xff]
    %v1300 = vld [vmem:[#allocation5 + $0xe68] sm:$0xff]
    %v1301 = vld [vmem:[#allocation5 + $0xe70] sm:$0xff]
    %v1302 = vld [vmem:[#allocation5 + $0xe78] sm:$0xff]
    %v1303 = vld [vmem:[#allocation5 + $0xe80] sm:$0xff]
    %v1304 = vld [vmem:[#allocation5 + $0xe88] sm:$0xff]
    %v1305 = vld [vmem:[#allocation5 + $0xe90] sm:$0xff]
    %v1306 = vld [vmem:[#allocation5 + $0xe98] sm:$0xff]
    %v1307 = vld [vmem:[#allocation5 + $0xea0] sm:$0xff]
    %v1308 = vld [vmem:[#allocation5 + $0xea8] sm:$0xff]
    %v1309 = vld [vmem:[#allocation5 + $0xeb0] sm:$0xff]
    %v1310 = vld [vmem:[#allocation5 + $0xeb8] sm:$0xff]
    %v1311 = vld [vmem:[#allocation5 + $0xec0] sm:$0xff]
    %v1312 = vld [vmem:[#allocation5 + $0xec8] sm:$0xff]
    %v1313 = vld [vmem:[#allocation5 + $0xed0] sm:$0xff]
    %v1314 = vld [vmem:[#allocation5 + $0xed8] sm:$0xff]
    %v1315 = vld [vmem:[#allocation5 + $0xee0] sm:$0xff]
    %v1316 = vld [vmem:[#allocation5 + $0xee8] sm:$0xff]
    %v1317 = vld [vmem:[#allocation5 + $0xef0] sm:$0xff]
    %v1318 = vld [vmem:[#allocation5 + $0xef8] sm:$0xff]
    %v1319 = vld [vmem:[#allocation5 + $0xf00] sm:$0xff]
    %v1320 = vld [vmem:[#allocation5 + $0xf08] sm:$0xff]
    %v1321 = vld [vmem:[#allocation5 + $0xf10] sm:$0xff]
    %v1322 = vld [vmem:[#allocation5 + $0xf18] sm:$0xff]
    %v1323 = vld [vmem:[#allocation5 + $0xf20] sm:$0xff]
    %v1324 = vld [vmem:[#allocation5 + $0xf28] sm:$0xff]
    %v1325 = vld [vmem:[#allocation5 + $0xf30] sm:$0xff]
    %v1326 = vld [vmem:[#allocation5 + $0xf38] sm:$0xff]
    %v1327 = vld [vmem:[#allocation5 + $0xf40] sm:$0xff]
    %v1328 = vld [vmem:[#allocation5 + $0xf48] sm:$0xff]
    %v1329 = vld [vmem:[#allocation5 + $0xf50] sm:$0xff]
    %v1330 = vld [vmem:[#allocation5 + $0xf58] sm:$0xff]
    %v1331 = vld [vmem:[#allocation5 + $0xf60] sm:$0xff]
    %v1332 = vld [vmem:[#allocation5 + $0xf68] sm:$0xff]
    %v1333 = vld [vmem:[#allocation5 + $0xf70] sm:$0xff]
    %v1334 = vld [vmem:[#allocation5 + $0xf78] sm:$0xff]
    %v1335 = vld [vmem:[#allocation5 + $0xf80] sm:$0xff]
    %v1336 = vld [vmem:[#allocation5 + $0xf88] sm:$0xff]
    %v1337 = vld [vmem:[#allocation5 + $0xf90] sm:$0xff]
    %v1338 = vld [vmem:[#allocation5 + $0xf98] sm:$0xff]
    %v1339 = vld [vmem:[#allocation5 + $0xfa0] sm:$0xff]
    %v1340 = vld [vmem:[#allocation5 + $0xfa8] sm:$0xff]
    %v1341 = vld [vmem:[#allocation5 + $0xfb0] sm:$0xff]
    %v1342 = vld [vmem:[#allocation5 + $0xfb8] sm:$0xff]
    %v1343 = vld [vmem:[#allocation5 + $0xfc0] sm:$0xff]
    %v1344 = vld [vmem:[#allocation5 + $0xfc8] sm:$0xff]
    %v1345 = vld [vmem:[#allocation5 + $0xfd0] sm:$0xff]
    %v1346 = vld [vmem:[#allocation5 + $0xfd8] sm:$0xff]
    %v1347 = vld [vmem:[#allocation5 + $0xfe0] sm:$0xff]
    %v1348 = vld [vmem:[#allocation5 + $0xfe8] sm:$0xff]
    %v1349 = vld [vmem:[#allocation5 + $0xff0] sm:$0xff]
    %v1350 = vld [vmem:[#allocation5 + $0xff8] sm:$0xff]
    %v1351 = vld [vmem:[#allocation7] sm:$0xff]
    %v1353 = vperm.slane %v1351, 0
    %v1354 = vperm.slane %v1351, 1
    %v1355 = vperm.slane %v1351, 2
    %v1356 = vperm.slane %v1351, 3
    %v1357 = vperm.slane %v1351, 4
    %v1358 = vperm.slane %v1351, 5
    %v1359 = vperm.slane %v1351, 6
    %v1360 = vperm.slane %v1351, 7
    %1369 = vmatpush.msra.mxu0 %v959
    %1370 = vmatpush.msra.mxu0 %v951
    %1371 = vmatpush.msra.mxu0 %v943
    %1372 = vmatpush.msra.mxu0 %v935
    %1373 = vmatpush.msra.mxu0 %v927
    %1374 = vmatpush.msra.mxu0 %v919
    %1375 = vmatpush.msra.mxu0 %v911
    %1376 = vmatpush.msra.mxu0 %v903
    %1377 = vmatpush.msra.mxu0 %v895
    %1378 = vmatpush.msra.mxu0 %v887
    %1379 = vmatpush.msra.mxu0 %v879
    %1380 = vmatpush.msra.mxu0 %v871
    %1381 = vmatpush.msra.mxu0 %v863
    %1382 = vmatpush.msra.mxu0 %v855
    %1383 = vmatpush.msra.mxu0 %v847
    %1384 = vmatpush.msra.mxu0 %v839
    %1385 = vmatmul.f32.gmra.mxu0 %v205
    %v1386 = vpop.f32.mrf.mxu0
    %v1387 = vadd.f32 %v1353, %v1386
    %1388 = vdwg.mxu0
    %1389 = vmatpush.msra.mxu0 %v1087
    %1390 = vmatpush.msra.mxu0 %v1079
    %1391 = vmatpush.msra.mxu0 %v1071
    %1392 = vmatpush.msra.mxu0 %v1063
    %1393 = vmatpush.msra.mxu0 %v1055
    %1394 = vmatpush.msra.mxu0 %v1047
    %1395 = vmatpush.msra.mxu0 %v1039
    %1396 = vmatpush.msra.mxu0 %v1031
    %1397 = vmatpush.msra.mxu0 %v1023
    %1398 = vmatpush.msra.mxu0 %v1015
    %1399 = vmatpush.msra.mxu0 %v1007
    %1400 = vmatpush.msra.mxu0 %v999
    %1401 = vmatpush.msra.mxu0 %v991
    %1402 = vmatpush.msra.mxu0 %v983
    %1403 = vmatpush.msra.mxu0 %v975
    %1404 = vmatpush.msra.mxu0 %v967
    %1405 = vmatmul.f32.gmra.mxu0 %v206
    %v1406 = vpop.f32.mrf.mxu0
    %v1407 = vadd.f32 %v1387, %v1406
    %1408 = vdwg.mxu0
    %1409 = vmatpush.msra.mxu0 %v1215
    %1410 = vmatpush.msra.mxu0 %v1207
    %1411 = vmatpush.msra.mxu0 %v1199
    %1412 = vmatpush.msra.mxu0 %v1191
    %1413 = vmatpush.msra.mxu0 %v1183
    %1414 = vmatpush.msra.mxu0 %v1175
    %1415 = vmatpush.msra.mxu0 %v1167
    %1416 = vmatpush.msra.mxu0 %v1159
    %1417 = vmatpush.msra.mxu0 %v1151
    %1418 = vmatpush.msra.mxu0 %v1143
    %1419 = vmatpush.msra.mxu0 %v1135
    %1420 = vmatpush.msra.mxu0 %v1127
    %1421 = vmatpush.msra.mxu0 %v1119
    %1422 = vmatpush.msra.mxu0 %v1111
    %1423 = vmatpush.msra.mxu0 %v1103
    %1424 = vmatpush.msra.mxu0 %v1095
    %1425 = vmatmul.f32.gmra.mxu0 %v207
    %v1426 = vpop.f32.mrf.mxu0
    %v1427 = vadd.f32 %v1407, %v1426
    %1428 = vdwg.mxu0
    %1429 = vmatpush.msra.mxu0 %v1343
    %1430 = vmatpush.msra.mxu0 %v1335
    %1431 = vmatpush.msra.mxu0 %v1327
    %1432 = vmatpush.msra.mxu0 %v1319
    %1433 = vmatpush.msra.mxu0 %v1311
    %1434 = vmatpush.msra.mxu0 %v1303
    %1435 = vmatpush.msra.mxu0 %v1295
    %1436 = vmatpush.msra.mxu0 %v1287
    %1437 = vmatpush.msra.mxu0 %v1279
    %1438 = vmatpush.msra.mxu0 %v1271
    %1439 = vmatpush.msra.mxu0 %v1263
    %1440 = vmatpush.msra.mxu0 %v1255
    %1441 = vmatpush.msra.mxu0 %v1247
    %1442 = vmatpush.msra.mxu0 %v1239
    %1443 = vmatpush.msra.mxu0 %v1231
    %1444 = vmatpush.msra.mxu0 %v1223
    %1445 = vmatmul.f32.gmra.mxu0 %v208
    %v1446 = vpop.f32.mrf.mxu0
    %v1447 = vadd.f32 %v1427, %v1446
    %1448 = vdwg.mxu0
    %1449 = vmatpush.msra.mxu0 %v960
    %1450 = vmatpush.msra.mxu0 %v952
    %1451 = vmatpush.msra.mxu0 %v944
    %1452 = vmatpush.msra.mxu0 %v936
    %1453 = vmatpush.msra.mxu0 %v928
    %1454 = vmatpush.msra.mxu0 %v920
    %1455 = vmatpush.msra.mxu0 %v912
    %1456 = vmatpush.msra.mxu0 %v904
    %1457 = vmatpush.msra.mxu0 %v896
    %1458 = vmatpush.msra.mxu0 %v888
    %1459 = vmatpush.msra.mxu0 %v880
    %1460 = vmatpush.msra.mxu0 %v872
    %1461 = vmatpush.msra.mxu0 %v864
    %1462 = vmatpush.msra.mxu0 %v856
    %1463 = vmatpush.msra.mxu0 %v848
    %1464 = vmatpush.msra.mxu0 %v840
    %1465 = vmatmul.f32.gmra.mxu0 %v205
    %v1466 = vpop.f32.mrf.mxu0
    %v1467 = vadd.f32 %v1354, %v1466
    %1468 = vdwg.mxu0
    %1469 = vmatpush.msra.mxu0 %v1088
    %1470 = vmatpush.msra.mxu0 %v1080
    %1471 = vmatpush.msra.mxu0 %v1072
    %1472 = vmatpush.msra.mxu0 %v1064
    %1473 = vmatpush.msra.mxu0 %v1056
    %1474 = vmatpush.msra.mxu0 %v1048
    %1475 = vmatpush.msra.mxu0 %v1040
    %1476 = vmatpush.msra.mxu0 %v1032
    %1477 = vmatpush.msra.mxu0 %v1024
    %1478 = vmatpush.msra.mxu0 %v1016
    %1479 = vmatpush.msra.mxu0 %v1008
    %1480 = vmatpush.msra.mxu0 %v1000
    %1481 = vmatpush.msra.mxu0 %v992
    %1482 = vmatpush.msra.mxu0 %v984
    %1483 = vmatpush.msra.mxu0 %v976
    %1484 = vmatpush.msra.mxu0 %v968
    %1485 = vmatmul.f32.gmra.mxu0 %v206
    %v1486 = vpop.f32.mrf.mxu0
    %v1487 = vadd.f32 %v1467, %v1486
    %1488 = vdwg.mxu0
    %1489 = vmatpush.msra.mxu0 %v1216
    %1490 = vmatpush.msra.mxu0 %v1208
    %1491 = vmatpush.msra.mxu0 %v1200
    %1492 = vmatpush.msra.mxu0 %v1192
    %1493 = vmatpush.msra.mxu0 %v1184
    %1494 = vmatpush.msra.mxu0 %v1176
    %1495 = vmatpush.msra.mxu0 %v1168
    %1496 = vmatpush.msra.mxu0 %v1160
    %1497 = vmatpush.msra.mxu0 %v1152
    %1498 = vmatpush.msra.mxu0 %v1144
    %1499 = vmatpush.msra.mxu0 %v1136
    %1500 = vmatpush.msra.mxu0 %v1128
    %1501 = vmatpush.msra.mxu0 %v1120
    %1502 = vmatpush.msra.mxu0 %v1112
    %1503 = vmatpush.msra.mxu0 %v1104
    %1504 = vmatpush.msra.mxu0 %v1096
    %1505 = vmatmul.f32.gmra.mxu0 %v207
    %v1506 = vpop.f32.mrf.mxu0
    %v1507 = vadd.f32 %v1487, %v1506
    %1508 = vdwg.mxu0
    %1509 = vmatpush.msra.mxu0 %v1344
    %1510 = vmatpush.msra.mxu0 %v1336
    %1511 = vmatpush.msra.mxu0 %v1328
    %1512 = vmatpush.msra.mxu0 %v1320
    %1513 = vmatpush.msra.mxu0 %v1312
    %1514 = vmatpush.msra.mxu0 %v1304
    %1515 = vmatpush.msra.mxu0 %v1296
    %1516 = vmatpush.msra.mxu0 %v1288
    %1517 = vmatpush.msra.mxu0 %v1280
    %1518 = vmatpush.msra.mxu0 %v1272
    %1519 = vmatpush.msra.mxu0 %v1264
    %1520 = vmatpush.msra.mxu0 %v1256
    %1521 = vmatpush.msra.mxu0 %v1248
    %1522 = vmatpush.msra.mxu0 %v1240
    %1523 = vmatpush.msra.mxu0 %v1232
    %1524 = vmatpush.msra.mxu0 %v1224
    %1525 = vmatmul.f32.gmra.mxu0 %v208
    %v1526 = vpop.f32.mrf.mxu0
    %v1527 = vadd.f32 %v1507, %v1526
    %1528 = vdwg.mxu0
    %1529 = vmatpush.msra.mxu0 %v961
    %1530 = vmatpush.msra.mxu0 %v953
    %1531 = vmatpush.msra.mxu0 %v945
    %1532 = vmatpush.msra.mxu0 %v937
    %1533 = vmatpush.msra.mxu0 %v929
    %1534 = vmatpush.msra.mxu0 %v921
    %1535 = vmatpush.msra.mxu0 %v913
    %1536 = vmatpush.msra.mxu0 %v905
    %1537 = vmatpush.msra.mxu0 %v897
    %1538 = vmatpush.msra.mxu0 %v889
    %1539 = vmatpush.msra.mxu0 %v881
    %1540 = vmatpush.msra.mxu0 %v873
    %1541 = vmatpush.msra.mxu0 %v865
    %1542 = vmatpush.msra.mxu0 %v857
    %1543 = vmatpush.msra.mxu0 %v849
    %1544 = vmatpush.msra.mxu0 %v841
    %1545 = vmatmul.f32.gmra.mxu0 %v205
    %v1546 = vpop.f32.mrf.mxu0
    %v1547 = vadd.f32 %v1355, %v1546
    %1548 = vdwg.mxu0
    %1549 = vmatpush.msra.mxu0 %v1089
    %1550 = vmatpush.msra.mxu0 %v1081
    %1551 = vmatpush.msra.mxu0 %v1073
    %1552 = vmatpush.msra.mxu0 %v1065
    %1553 = vmatpush.msra.mxu0 %v1057
    %1554 = vmatpush.msra.mxu0 %v1049
    %1555 = vmatpush.msra.mxu0 %v1041
    %1556 = vmatpush.msra.mxu0 %v1033
    %1557 = vmatpush.msra.mxu0 %v1025
    %1558 = vmatpush.msra.mxu0 %v1017
    %1559 = vmatpush.msra.mxu0 %v1009
    %1560 = vmatpush.msra.mxu0 %v1001
    %1561 = vmatpush.msra.mxu0 %v993
    %1562 = vmatpush.msra.mxu0 %v985
    %1563 = vmatpush.msra.mxu0 %v977
    %1564 = vmatpush.msra.mxu0 %v969
    %1565 = vmatmul.f32.gmra.mxu0 %v206
    %v1566 = vpop.f32.mrf.mxu0
    %v1567 = vadd.f32 %v1547, %v1566
    %1568 = vdwg.mxu0
    %1569 = vmatpush.msra.mxu0 %v1217
    %1570 = vmatpush.msra.mxu0 %v1209
    %1571 = vmatpush.msra.mxu0 %v1201
    %1572 = vmatpush.msra.mxu0 %v1193
    %1573 = vmatpush.msra.mxu0 %v1185
    %1574 = vmatpush.msra.mxu0 %v1177
    %1575 = vmatpush.msra.mxu0 %v1169
    %1576 = vmatpush.msra.mxu0 %v1161
    %1577 = vmatpush.msra.mxu0 %v1153
    %1578 = vmatpush.msra.mxu0 %v1145
    %1579 = vmatpush.msra.mxu0 %v1137
    %1580 = vmatpush.msra.mxu0 %v1129
    %1581 = vmatpush.msra.mxu0 %v1121
    %1582 = vmatpush.msra.mxu0 %v1113
    %1583 = vmatpush.msra.mxu0 %v1105
    %1584 = vmatpush.msra.mxu0 %v1097
    %1585 = vmatmul.f32.gmra.mxu0 %v207
    %v1586 = vpop.f32.mrf.mxu0
    %v1587 = vadd.f32 %v1567, %v1586
    %1588 = vdwg.mxu0
    %1589 = vmatpush.msra.mxu0 %v1345
    %1590 = vmatpush.msra.mxu0 %v1337
    %1591 = vmatpush.msra.mxu0 %v1329
    %1592 = vmatpush.msra.mxu0 %v1321
    %1593 = vmatpush.msra.mxu0 %v1313
    %1594 = vmatpush.msra.mxu0 %v1305
    %1595 = vmatpush.msra.mxu0 %v1297
    %1596 = vmatpush.msra.mxu0 %v1289
    %1597 = vmatpush.msra.mxu0 %v1281
    %1598 = vmatpush.msra.mxu0 %v1273
    %1599 = vmatpush.msra.mxu0 %v1265
    %1600 = vmatpush.msra.mxu0 %v1257
    %1601 = vmatpush.msra.mxu0 %v1249
    %1602 = vmatpush.msra.mxu0 %v1241
    %1603 = vmatpush.msra.mxu0 %v1233
    %1604 = vmatpush.msra.mxu0 %v1225
    %1605 = vmatmul.f32.gmra.mxu0 %v208
    %v1606 = vpop.f32.mrf.mxu0
    %v1607 = vadd.f32 %v1587, %v1606
    %1608 = vdwg.mxu0
    %1609 = vmatpush.msra.mxu0 %v962
    %1610 = vmatpush.msra.mxu0 %v954
    %1611 = vmatpush.msra.mxu0 %v946
    %1612 = vmatpush.msra.mxu0 %v938
    %1613 = vmatpush.msra.mxu0 %v930
    %1614 = vmatpush.msra.mxu0 %v922
    %1615 = vmatpush.msra.mxu0 %v914
    %1616 = vmatpush.msra.mxu0 %v906
    %1617 = vmatpush.msra.mxu0 %v898
    %1618 = vmatpush.msra.mxu0 %v890
    %1619 = vmatpush.msra.mxu0 %v882
    %1620 = vmatpush.msra.mxu0 %v874
    %1621 = vmatpush.msra.mxu0 %v866
    %1622 = vmatpush.msra.mxu0 %v858
    %1623 = vmatpush.msra.mxu0 %v850
    %1624 = vmatpush.msra.mxu0 %v842
    %1625 = vmatmul.f32.gmra.mxu0 %v205
    %v1626 = vpop.f32.mrf.mxu0
    %v1627 = vadd.f32 %v1356, %v1626
    %1628 = vdwg.mxu0
    %1629 = vmatpush.msra.mxu0 %v1090
    %1630 = vmatpush.msra.mxu0 %v1082
    %1631 = vmatpush.msra.mxu0 %v1074
    %1632 = vmatpush.msra.mxu0 %v1066
    %1633 = vmatpush.msra.mxu0 %v1058
    %1634 = vmatpush.msra.mxu0 %v1050
    %1635 = vmatpush.msra.mxu0 %v1042
    %1636 = vmatpush.msra.mxu0 %v1034
    %1637 = vmatpush.msra.mxu0 %v1026
    %1638 = vmatpush.msra.mxu0 %v1018
    %1639 = vmatpush.msra.mxu0 %v1010
    %1640 = vmatpush.msra.mxu0 %v1002
    %1641 = vmatpush.msra.mxu0 %v994
    %1642 = vmatpush.msra.mxu0 %v986
    %1643 = vmatpush.msra.mxu0 %v978
    %1644 = vmatpush.msra.mxu0 %v970
    %1645 = vmatmul.f32.gmra.mxu0 %v206
    %v1646 = vpop.f32.mrf.mxu0
    %v1647 = vadd.f32 %v1627, %v1646
    %1648 = vdwg.mxu0
    %1649 = vmatpush.msra.mxu0 %v1218
    %1650 = vmatpush.msra.mxu0 %v1210
    %1651 = vmatpush.msra.mxu0 %v1202
    %1652 = vmatpush.msra.mxu0 %v1194
    %1653 = vmatpush.msra.mxu0 %v1186
    %1654 = vmatpush.msra.mxu0 %v1178
    %1655 = vmatpush.msra.mxu0 %v1170
    %1656 = vmatpush.msra.mxu0 %v1162
    %1657 = vmatpush.msra.mxu0 %v1154
    %1658 = vmatpush.msra.mxu0 %v1146
    %1659 = vmatpush.msra.mxu0 %v1138
    %1660 = vmatpush.msra.mxu0 %v1130
    %1661 = vmatpush.msra.mxu0 %v1122
    %1662 = vmatpush.msra.mxu0 %v1114
    %1663 = vmatpush.msra.mxu0 %v1106
    %1664 = vmatpush.msra.mxu0 %v1098
    %1665 = vmatmul.f32.gmra.mxu0 %v207
    %v1666 = vpop.f32.mrf.mxu0
    %v1667 = vadd.f32 %v1647, %v1666
    %1668 = vdwg.mxu0
    %1669 = vmatpush.msra.mxu0 %v1346
    %1670 = vmatpush.msra.mxu0 %v1338
    %1671 = vmatpush.msra.mxu0 %v1330
    %1672 = vmatpush.msra.mxu0 %v1322
    %1673 = vmatpush.msra.mxu0 %v1314
    %1674 = vmatpush.msra.mxu0 %v1306
    %1675 = vmatpush.msra.mxu0 %v1298
    %1676 = vmatpush.msra.mxu0 %v1290
    %1677 = vmatpush.msra.mxu0 %v1282
    %1678 = vmatpush.msra.mxu0 %v1274
    %1679 = vmatpush.msra.mxu0 %v1266
    %1680 = vmatpush.msra.mxu0 %v1258
    %1681 = vmatpush.msra.mxu0 %v1250
    %1682 = vmatpush.msra.mxu0 %v1242
    %1683 = vmatpush.msra.mxu0 %v1234
    %1684 = vmatpush.msra.mxu0 %v1226
    %1685 = vmatmul.f32.gmra.mxu0 %v208
    %v1686 = vpop.f32.mrf.mxu0
    %v1687 = vadd.f32 %v1667, %v1686
    %1688 = vdwg.mxu0
    %1689 = vmatpush.msra.mxu0 %v963
    %1690 = vmatpush.msra.mxu0 %v955
    %1691 = vmatpush.msra.mxu0 %v947
    %1692 = vmatpush.msra.mxu0 %v939
    %1693 = vmatpush.msra.mxu0 %v931
    %1694 = vmatpush.msra.mxu0 %v923
    %1695 = vmatpush.msra.mxu0 %v915
    %1696 = vmatpush.msra.mxu0 %v907
    %1697 = vmatpush.msra.mxu0 %v899
    %1698 = vmatpush.msra.mxu0 %v891
    %1699 = vmatpush.msra.mxu0 %v883
    %1700 = vmatpush.msra.mxu0 %v875
    %1701 = vmatpush.msra.mxu0 %v867
    %1702 = vmatpush.msra.mxu0 %v859
    %1703 = vmatpush.msra.mxu0 %v851
    %1704 = vmatpush.msra.mxu0 %v843
    %1705 = vmatmul.f32.gmra.mxu0 %v205
    %v1706 = vpop.f32.mrf.mxu0
    %v1707 = vadd.f32 %v1357, %v1706
    %1708 = vdwg.mxu0
    %1709 = vmatpush.msra.mxu0 %v1091
    %1710 = vmatpush.msra.mxu0 %v1083
    %1711 = vmatpush.msra.mxu0 %v1075
    %1712 = vmatpush.msra.mxu0 %v1067
    %1713 = vmatpush.msra.mxu0 %v1059
    %1714 = vmatpush.msra.mxu0 %v1051
    %1715 = vmatpush.msra.mxu0 %v1043
    %1716 = vmatpush.msra.mxu0 %v1035
    %1717 = vmatpush.msra.mxu0 %v1027
    %1718 = vmatpush.msra.mxu0 %v1019
    %1719 = vmatpush.msra.mxu0 %v1011
    %1720 = vmatpush.msra.mxu0 %v1003
    %1721 = vmatpush.msra.mxu0 %v995
    %1722 = vmatpush.msra.mxu0 %v987
    %1723 = vmatpush.msra.mxu0 %v979
    %1724 = vmatpush.msra.mxu0 %v971
    %1725 = vmatmul.f32.gmra.mxu0 %v206
    %v1726 = vpop.f32.mrf.mxu0
    %v1727 = vadd.f32 %v1707, %v1726
    %1728 = vdwg.mxu0
    %1729 = vmatpush.msra.mxu0 %v1219
    %1730 = vmatpush.msra.mxu0 %v1211
    %1731 = vmatpush.msra.mxu0 %v1203
    %1732 = vmatpush.msra.mxu0 %v1195
    %1733 = vmatpush.msra.mxu0 %v1187
    %1734 = vmatpush.msra.mxu0 %v1179
    %1735 = vmatpush.msra.mxu0 %v1171
    %1736 = vmatpush.msra.mxu0 %v1163
    %1737 = vmatpush.msra.mxu0 %v1155
    %1738 = vmatpush.msra.mxu0 %v1147
    %1739 = vmatpush.msra.mxu0 %v1139
    %1740 = vmatpush.msra.mxu0 %v1131
    %1741 = vmatpush.msra.mxu0 %v1123
    %1742 = vmatpush.msra.mxu0 %v1115
    %1743 = vmatpush.msra.mxu0 %v1107
    %1744 = vmatpush.msra.mxu0 %v1099
    %1745 = vmatmul.f32.gmra.mxu0 %v207
    %v1746 = vpop.f32.mrf.mxu0
    %v1747 = vadd.f32 %v1727, %v1746
    %1748 = vdwg.mxu0
    %1749 = vmatpush.msra.mxu0 %v1347
    %1750 = vmatpush.msra.mxu0 %v1339
    %1751 = vmatpush.msra.mxu0 %v1331
    %1752 = vmatpush.msra.mxu0 %v1323
    %1753 = vmatpush.msra.mxu0 %v1315
    %1754 = vmatpush.msra.mxu0 %v1307
    %1755 = vmatpush.msra.mxu0 %v1299
    %1756 = vmatpush.msra.mxu0 %v1291
    %1757 = vmatpush.msra.mxu0 %v1283
    %1758 = vmatpush.msra.mxu0 %v1275
    %1759 = vmatpush.msra.mxu0 %v1267
    %1760 = vmatpush.msra.mxu0 %v1259
    %1761 = vmatpush.msra.mxu0 %v1251
    %1762 = vmatpush.msra.mxu0 %v1243
    %1763 = vmatpush.msra.mxu0 %v1235
    %1764 = vmatpush.msra.mxu0 %v1227
    %1765 = vmatmul.f32.gmra.mxu0 %v208
    %v1766 = vpop.f32.mrf.mxu0
    %v1767 = vadd.f32 %v1747, %v1766
    %1768 = vdwg.mxu0
    %1769 = vmatpush.msra.mxu0 %v964
    %1770 = vmatpush.msra.mxu0 %v956
    %1771 = vmatpush.msra.mxu0 %v948
    %1772 = vmatpush.msra.mxu0 %v940
    %1773 = vmatpush.msra.mxu0 %v932
    %1774 = vmatpush.msra.mxu0 %v924
    %1775 = vmatpush.msra.mxu0 %v916
    %1776 = vmatpush.msra.mxu0 %v908
    %1777 = vmatpush.msra.mxu0 %v900
    %1778 = vmatpush.msra.mxu0 %v892
    %1779 = vmatpush.msra.mxu0 %v884
    %1780 = vmatpush.msra.mxu0 %v876
    %1781 = vmatpush.msra.mxu0 %v868
    %1782 = vmatpush.msra.mxu0 %v860
    %1783 = vmatpush.msra.mxu0 %v852
    %1784 = vmatpush.msra.mxu0 %v844
    %1785 = vmatmul.f32.gmra.mxu0 %v205
    %v1786 = vpop.f32.mrf.mxu0
    %v1787 = vadd.f32 %v1358, %v1786
    %1788 = vdwg.mxu0
    %1789 = vmatpush.msra.mxu0 %v1092
    %1790 = vmatpush.msra.mxu0 %v1084
    %1791 = vmatpush.msra.mxu0 %v1076
    %1792 = vmatpush.msra.mxu0 %v1068
    %1793 = vmatpush.msra.mxu0 %v1060
    %1794 = vmatpush.msra.mxu0 %v1052
    %1795 = vmatpush.msra.mxu0 %v1044
    %1796 = vmatpush.msra.mxu0 %v1036
    %1797 = vmatpush.msra.mxu0 %v1028
    %1798 = vmatpush.msra.mxu0 %v1020
    %1799 = vmatpush.msra.mxu0 %v1012
    %1800 = vmatpush.msra.mxu0 %v1004
    %1801 = vmatpush.msra.mxu0 %v996
    %1802 = vmatpush.msra.mxu0 %v988
    %1803 = vmatpush.msra.mxu0 %v980
    %1804 = vmatpush.msra.mxu0 %v972
    %1805 = vmatmul.f32.gmra.mxu0 %v206
    %v1806 = vpop.f32.mrf.mxu0
    %v1807 = vadd.f32 %v1787, %v1806
    %1808 = vdwg.mxu0
    %1809 = vmatpush.msra.mxu0 %v1220
    %1810 = vmatpush.msra.mxu0 %v1212
    %1811 = vmatpush.msra.mxu0 %v1204
    %1812 = vmatpush.msra.mxu0 %v1196
    %1813 = vmatpush.msra.mxu0 %v1188
    %1814 = vmatpush.msra.mxu0 %v1180
    %1815 = vmatpush.msra.mxu0 %v1172
    %1816 = vmatpush.msra.mxu0 %v1164
    %1817 = vmatpush.msra.mxu0 %v1156
    %1818 = vmatpush.msra.mxu0 %v1148
    %1819 = vmatpush.msra.mxu0 %v1140
    %1820 = vmatpush.msra.mxu0 %v1132
    %1821 = vmatpush.msra.mxu0 %v1124
    %1822 = vmatpush.msra.mxu0 %v1116
    %1823 = vmatpush.msra.mxu0 %v1108
    %1824 = vmatpush.msra.mxu0 %v1100
    %1825 = vmatmul.f32.gmra.mxu0 %v207
    %v1826 = vpop.f32.mrf.mxu0
    %v1827 = vadd.f32 %v1807, %v1826
    %1828 = vdwg.mxu0
    %1829 = vmatpush.msra.mxu0 %v1348
    %1830 = vmatpush.msra.mxu0 %v1340
    %1831 = vmatpush.msra.mxu0 %v1332
    %1832 = vmatpush.msra.mxu0 %v1324
    %1833 = vmatpush.msra.mxu0 %v1316
    %1834 = vmatpush.msra.mxu0 %v1308
    %1835 = vmatpush.msra.mxu0 %v1300
    %1836 = vmatpush.msra.mxu0 %v1292
    %1837 = vmatpush.msra.mxu0 %v1284
    %1838 = vmatpush.msra.mxu0 %v1276
    %1839 = vmatpush.msra.mxu0 %v1268
    %1840 = vmatpush.msra.mxu0 %v1260
    %1841 = vmatpush.msra.mxu0 %v1252
    %1842 = vmatpush.msra.mxu0 %v1244
    %1843 = vmatpush.msra.mxu0 %v1236
    %1844 = vmatpush.msra.mxu0 %v1228
    %1845 = vmatmul.f32.gmra.mxu0 %v208
    %v1846 = vpop.f32.mrf.mxu0
    %v1847 = vadd.f32 %v1827, %v1846
    %1848 = vdwg.mxu0
    %1849 = vmatpush.msra.mxu0 %v965
    %1850 = vmatpush.msra.mxu0 %v957
    %1851 = vmatpush.msra.mxu0 %v949
    %1852 = vmatpush.msra.mxu0 %v941
    %1853 = vmatpush.msra.mxu0 %v933
    %1854 = vmatpush.msra.mxu0 %v925
    %1855 = vmatpush.msra.mxu0 %v917
    %1856 = vmatpush.msra.mxu0 %v909
    %1857 = vmatpush.msra.mxu0 %v901
    %1858 = vmatpush.msra.mxu0 %v893
    %1859 = vmatpush.msra.mxu0 %v885
    %1860 = vmatpush.msra.mxu0 %v877
    %1861 = vmatpush.msra.mxu0 %v869
    %1862 = vmatpush.msra.mxu0 %v861
    %1863 = vmatpush.msra.mxu0 %v853
    %1864 = vmatpush.msra.mxu0 %v845
    %1865 = vmatmul.f32.gmra.mxu0 %v205
    %v1866 = vpop.f32.mrf.mxu0
    %v1867 = vadd.f32 %v1359, %v1866
    %1868 = vdwg.mxu0
    %1869 = vmatpush.msra.mxu0 %v1093
    %1870 = vmatpush.msra.mxu0 %v1085
    %1871 = vmatpush.msra.mxu0 %v1077
    %1872 = vmatpush.msra.mxu0 %v1069
    %1873 = vmatpush.msra.mxu0 %v1061
    %1874 = vmatpush.msra.mxu0 %v1053
    %1875 = vmatpush.msra.mxu0 %v1045
    %1876 = vmatpush.msra.mxu0 %v1037
    %1877 = vmatpush.msra.mxu0 %v1029
    %1878 = vmatpush.msra.mxu0 %v1021
    %1879 = vmatpush.msra.mxu0 %v1013
    %1880 = vmatpush.msra.mxu0 %v1005
    %1881 = vmatpush.msra.mxu0 %v997
    %1882 = vmatpush.msra.mxu0 %v989
    %1883 = vmatpush.msra.mxu0 %v981
    %1884 = vmatpush.msra.mxu0 %v973
    %1885 = vmatmul.f32.gmra.mxu0 %v206
    %v1886 = vpop.f32.mrf.mxu0
    %v1887 = vadd.f32 %v1867, %v1886
    %1888 = vdwg.mxu0
    %1889 = vmatpush.msra.mxu0 %v1221
    %1890 = vmatpush.msra.mxu0 %v1213
    %1891 = vmatpush.msra.mxu0 %v1205
    %1892 = vmatpush.msra.mxu0 %v1197
    %1893 = vmatpush.msra.mxu0 %v1189
    %1894 = vmatpush.msra.mxu0 %v1181
    %1895 = vmatpush.msra.mxu0 %v1173
    %1896 = vmatpush.msra.mxu0 %v1165
    %1897 = vmatpush.msra.mxu0 %v1157
    %1898 = vmatpush.msra.mxu0 %v1149
    %1899 = vmatpush.msra.mxu0 %v1141
    %1900 = vmatpush.msra.mxu0 %v1133
    %1901 = vmatpush.msra.mxu0 %v1125
    %1902 = vmatpush.msra.mxu0 %v1117
    %1903 = vmatpush.msra.mxu0 %v1109
    %1904 = vmatpush.msra.mxu0 %v1101
    %1905 = vmatmul.f32.gmra.mxu0 %v207
    %v1906 = vpop.f32.mrf.mxu0
    %v1907 = vadd.f32 %v1887, %v1906
    %1908 = vdwg.mxu0
    %1909 = vmatpush.msra.mxu0 %v1349
    %1910 = vmatpush.msra.mxu0 %v1341
    %1911 = vmatpush.msra.mxu0 %v1333
    %1912 = vmatpush.msra.mxu0 %v1325
    %1913 = vmatpush.msra.mxu0 %v1317
    %1914 = vmatpush.msra.mxu0 %v1309
    %1915 = vmatpush.msra.mxu0 %v1301
    %1916 = vmatpush.msra.mxu0 %v1293
    %1917 = vmatpush.msra.mxu0 %v1285
    %1918 = vmatpush.msra.mxu0 %v1277
    %1919 = vmatpush.msra.mxu0 %v1269
    %1920 = vmatpush.msra.mxu0 %v1261
    %1921 = vmatpush.msra.mxu0 %v1253
    %1922 = vmatpush.msra.mxu0 %v1245
    %1923 = vmatpush.msra.mxu0 %v1237
    %1924 = vmatpush.msra.mxu0 %v1229
    %1925 = vmatmul.f32.gmra.mxu0 %v208
    %v1926 = vpop.f32.mrf.mxu0
    %v1927 = vadd.f32 %v1907, %v1926
    %1928 = vdwg.mxu0
    %1929 = vmatpush.msra.mxu0 %v966
    %1930 = vmatpush.msra.mxu0 %v958
    %1931 = vmatpush.msra.mxu0 %v950
    %1932 = vmatpush.msra.mxu0 %v942
    %1933 = vmatpush.msra.mxu0 %v934
    %1934 = vmatpush.msra.mxu0 %v926
    %1935 = vmatpush.msra.mxu0 %v918
    %1936 = vmatpush.msra.mxu0 %v910
    %1937 = vmatpush.msra.mxu0 %v902
    %1938 = vmatpush.msra.mxu0 %v894
    %1939 = vmatpush.msra.mxu0 %v886
    %1940 = vmatpush.msra.mxu0 %v878
    %1941 = vmatpush.msra.mxu0 %v870
    %1942 = vmatpush.msra.mxu0 %v862
    %1943 = vmatpush.msra.mxu0 %v854
    %1944 = vmatpush.msra.mxu0 %v846
    %1945 = vmatmul.f32.gmra.mxu0 %v205
    %v1946 = vpop.f32.mrf.mxu0
    %v1947 = vadd.f32 %v1360, %v1946
    %1948 = vdwg.mxu0
    %1949 = vmatpush.msra.mxu0 %v1094
    %1950 = vmatpush.msra.mxu0 %v1086
    %1951 = vmatpush.msra.mxu0 %v1078
    %1952 = vmatpush.msra.mxu0 %v1070
    %1953 = vmatpush.msra.mxu0 %v1062
    %1954 = vmatpush.msra.mxu0 %v1054
    %1955 = vmatpush.msra.mxu0 %v1046
    %1956 = vmatpush.msra.mxu0 %v1038
    %1957 = vmatpush.msra.mxu0 %v1030
    %1958 = vmatpush.msra.mxu0 %v1022
    %1959 = vmatpush.msra.mxu0 %v1014
    %1960 = vmatpush.msra.mxu0 %v1006
    %1961 = vmatpush.msra.mxu0 %v998
    %1962 = vmatpush.msra.mxu0 %v990
    %1963 = vmatpush.msra.mxu0 %v982
    %1964 = vmatpush.msra.mxu0 %v974
    %1965 = vmatmul.f32.gmra.mxu0 %v206
    %v1966 = vpop.f32.mrf.mxu0
    %v1967 = vadd.f32 %v1947, %v1966
    %1968 = vdwg.mxu0
    %1969 = vmatpush.msra.mxu0 %v1222
    %1970 = vmatpush.msra.mxu0 %v1214
    %1971 = vmatpush.msra.mxu0 %v1206
    %1972 = vmatpush.msra.mxu0 %v1198
    %1973 = vmatpush.msra.mxu0 %v1190
    %1974 = vmatpush.msra.mxu0 %v1182
    %1975 = vmatpush.msra.mxu0 %v1174
    %1976 = vmatpush.msra.mxu0 %v1166
    %1977 = vmatpush.msra.mxu0 %v1158
    %1978 = vmatpush.msra.mxu0 %v1150
    %1979 = vmatpush.msra.mxu0 %v1142
    %1980 = vmatpush.msra.mxu0 %v1134
    %1981 = vmatpush.msra.mxu0 %v1126
    %1982 = vmatpush.msra.mxu0 %v1118
    %1983 = vmatpush.msra.mxu0 %v1110
    %1984 = vmatpush.msra.mxu0 %v1102
    %1985 = vmatmul.f32.gmra.mxu0 %v207
    %v1986 = vpop.f32.mrf.mxu0
    %v1987 = vadd.f32 %v1967, %v1986
    %1988 = vdwg.mxu0
    %1989 = vmatpush.msra.mxu0 %v1350
    %1990 = vmatpush.msra.mxu0 %v1342
    %1991 = vmatpush.msra.mxu0 %v1334
    %1992 = vmatpush.msra.mxu0 %v1326
    %1993 = vmatpush.msra.mxu0 %v1318
    %1994 = vmatpush.msra.mxu0 %v1310
    %1995 = vmatpush.msra.mxu0 %v1302
    %1996 = vmatpush.msra.mxu0 %v1294
    %1997 = vmatpush.msra.mxu0 %v1286
    %1998 = vmatpush.msra.mxu0 %v1278
    %1999 = vmatpush.msra.mxu0 %v1270
    %2000 = vmatpush.msra.mxu0 %v1262
    %2001 = vmatpush.msra.mxu0 %v1254
    %2002 = vmatpush.msra.mxu0 %v1246
    %2003 = vmatpush.msra.mxu0 %v1238
    %2004 = vmatpush.msra.mxu0 %v1230
    %2005 = vmatmul.f32.gmra.mxu0 %v208
    %v2006 = vpop.f32.mrf.mxu0
    %v2007 = vadd.f32 %v1987, %v2006
    %2008 = vdwg.mxu0
    %v2009 = vmax.f32 %v1447, 0.0
    %v2010 = vmax.f32 %v1527, 0.0
    %v2011 = vmax.f32 %v1607, 0.0
    %v2012 = vmax.f32 %v1687, 0.0
    %v2013 = vmax.f32 %v1767, 0.0
    %v2014 = vmax.f32 %v1847, 0.0
    %v2015 = vmax.f32 %v1927, 0.0
    %v2016 = vmax.f32 %v2007, 0.0
    %v2017 = vmul.f32 %v2009, %v697
    %v2018 = vmul.f32 %v2010, %v717
    %v2019 = vmul.f32 %v2011, %v737
    %v2020 = vmul.f32 %v2012, %v757
    %v2021 = vmul.f32 %v2013, %v777
    %v2022 = vmul.f32 %v2014, %v797
    %v2023 = vmul.f32 %v2015, %v817
    %v2024 = vmul.f32 %v2016, %v837
    %v2025 = vld [vmem:[#allocation11] sm:$0xff]
    %v2026 = vld [vmem:[#allocation11 + $0x8] sm:$0xff]
    %v2027 = vld [vmem:[#allocation11 + $0x10] sm:$0xff]
    %v2028 = vld [vmem:[#allocation11 + $0x18] sm:$0xff]
    %v2029 = vld [vmem:[#allocation11 + $0x20] sm:$0xff]
    %v2030 = vld [vmem:[#allocation11 + $0x28] sm:$0xff]
    %v2031 = vld [vmem:[#allocation11 + $0x30] sm:$0xff]
    %v2032 = vld [vmem:[#allocation11 + $0x38] sm:$0xff]
    %v2033 = vld [vmem:[#allocation11 + $0x40] sm:$0xff]
    %v2034 = vld [vmem:[#allocation11 + $0x48] sm:$0xff]
    %v2035 = vld [vmem:[#allocation11 + $0x50] sm:$0xff]
    %v2036 = vld [vmem:[#allocation11 + $0x58] sm:$0xff]
    %v2037 = vld [vmem:[#allocation11 + $0x60] sm:$0xff]
    %v2038 = vld [vmem:[#allocation11 + $0x68] sm:$0xff]
    %v2039 = vld [vmem:[#allocation11 + $0x70] sm:$0xff]
    %v2040 = vld [vmem:[#allocation11 + $0x78] sm:$0xff]
    %v2041 = vld [vmem:[#allocation11 + $0x80] sm:$0xff]
    %v2042 = vld [vmem:[#allocation11 + $0x88] sm:$0xff]
    %v2043 = vld [vmem:[#allocation11 + $0x90] sm:$0xff]
    %v2044 = vld [vmem:[#allocation11 + $0x98] sm:$0xff]
    %v2045 = vld [vmem:[#allocation11 + $0xa0] sm:$0xff]
    %v2046 = vld [vmem:[#allocation11 + $0xa8] sm:$0xff]
    %v2047 = vld [vmem:[#allocation11 + $0xb0] sm:$0xff]
    %v2048 = vld [vmem:[#allocation11 + $0xb8] sm:$0xff]
    %v2049 = vld [vmem:[#allocation11 + $0xc0] sm:$0xff]
    %v2050 = vld [vmem:[#allocation11 + $0xc8] sm:$0xff]
    %v2051 = vld [vmem:[#allocation11 + $0xd0] sm:$0xff]
    %v2052 = vld [vmem:[#allocation11 + $0xd8] sm:$0xff]
    %v2053 = vld [vmem:[#allocation11 + $0xe0] sm:$0xff]
    %v2054 = vld [vmem:[#allocation11 + $0xe8] sm:$0xff]
    %v2055 = vld [vmem:[#allocation11 + $0xf0] sm:$0xff]
    %v2056 = vld [vmem:[#allocation11 + $0xf8] sm:$0xff]
    %v2057 = vld [vmem:[#allocation11 + $0x100] sm:$0xff]
    %v2058 = vld [vmem:[#allocation11 + $0x108] sm:$0xff]
    %v2059 = vld [vmem:[#allocation11 + $0x110] sm:$0xff]
    %v2060 = vld [vmem:[#allocation11 + $0x118] sm:$0xff]
    %v2061 = vld [vmem:[#allocation11 + $0x120] sm:$0xff]
    %v2062 = vld [vmem:[#allocation11 + $0x128] sm:$0xff]
    %v2063 = vld [vmem:[#allocation11 + $0x130] sm:$0xff]
    %v2064 = vld [vmem:[#allocation11 + $0x138] sm:$0xff]
    %v2065 = vld [vmem:[#allocation11 + $0x140] sm:$0xff]
    %v2066 = vld [vmem:[#allocation11 + $0x148] sm:$0xff]
    %v2067 = vld [vmem:[#allocation11 + $0x150] sm:$0xff]
    %v2068 = vld [vmem:[#allocation11 + $0x158] sm:$0xff]
    %v2069 = vld [vmem:[#allocation11 + $0x160] sm:$0xff]
    %v2070 = vld [vmem:[#allocation11 + $0x168] sm:$0xff]
    %v2071 = vld [vmem:[#allocation11 + $0x170] sm:$0xff]
    %v2072 = vld [vmem:[#allocation11 + $0x178] sm:$0xff]
    %v2073 = vld [vmem:[#allocation11 + $0x180] sm:$0xff]
    %v2074 = vld [vmem:[#allocation11 + $0x188] sm:$0xff]
    %v2075 = vld [vmem:[#allocation11 + $0x190] sm:$0xff]
    %v2076 = vld [vmem:[#allocation11 + $0x198] sm:$0xff]
    %v2077 = vld [vmem:[#allocation11 + $0x1a0] sm:$0xff]
    %v2078 = vld [vmem:[#allocation11 + $0x1a8] sm:$0xff]
    %v2079 = vld [vmem:[#allocation11 + $0x1b0] sm:$0xff]
    %v2080 = vld [vmem:[#allocation11 + $0x1b8] sm:$0xff]
    %v2081 = vld [vmem:[#allocation11 + $0x1c0] sm:$0xff]
    %v2082 = vld [vmem:[#allocation11 + $0x1c8] sm:$0xff]
    %v2083 = vld [vmem:[#allocation11 + $0x1d0] sm:$0xff]
    %v2084 = vld [vmem:[#allocation11 + $0x1d8] sm:$0xff]
    %v2085 = vld [vmem:[#allocation11 + $0x1e0] sm:$0xff]
    %v2086 = vld [vmem:[#allocation11 + $0x1e8] sm:$0xff]
    %v2087 = vld [vmem:[#allocation11 + $0x1f0] sm:$0xff]
    %v2088 = vld [vmem:[#allocation11 + $0x1f8] sm:$0xff]
    %v2089 = vld [vmem:[#allocation11 + $0x200] sm:$0xff]
    %v2090 = vld [vmem:[#allocation11 + $0x208] sm:$0xff]
    %v2091 = vld [vmem:[#allocation11 + $0x210] sm:$0xff]
    %v2092 = vld [vmem:[#allocation11 + $0x218] sm:$0xff]
    %v2093 = vld [vmem:[#allocation11 + $0x220] sm:$0xff]
    %v2094 = vld [vmem:[#allocation11 + $0x228] sm:$0xff]
    %v2095 = vld [vmem:[#allocation11 + $0x230] sm:$0xff]
    %v2096 = vld [vmem:[#allocation11 + $0x238] sm:$0xff]
    %v2097 = vld [vmem:[#allocation11 + $0x240] sm:$0xff]
    %v2098 = vld [vmem:[#allocation11 + $0x248] sm:$0xff]
    %v2099 = vld [vmem:[#allocation11 + $0x250] sm:$0xff]
    %v2100 = vld [vmem:[#allocation11 + $0x258] sm:$0xff]
    %v2101 = vld [vmem:[#allocation11 + $0x260] sm:$0xff]
    %v2102 = vld [vmem:[#allocation11 + $0x268] sm:$0xff]
    %v2103 = vld [vmem:[#allocation11 + $0x270] sm:$0xff]
    %v2104 = vld [vmem:[#allocation11 + $0x278] sm:$0xff]
    %v2105 = vld [vmem:[#allocation11 + $0x280] sm:$0xff]
    %v2106 = vld [vmem:[#allocation11 + $0x288] sm:$0xff]
    %v2107 = vld [vmem:[#allocation11 + $0x290] sm:$0xff]
    %v2108 = vld [vmem:[#allocation11 + $0x298] sm:$0xff]
    %v2109 = vld [vmem:[#allocation11 + $0x2a0] sm:$0xff]
    %v2110 = vld [vmem:[#allocation11 + $0x2a8] sm:$0xff]
    %v2111 = vld [vmem:[#allocation11 + $0x2b0] sm:$0xff]
    %v2112 = vld [vmem:[#allocation11 + $0x2b8] sm:$0xff]
    %v2113 = vld [vmem:[#allocation11 + $0x2c0] sm:$0xff]
    %v2114 = vld [vmem:[#allocation11 + $0x2c8] sm:$0xff]
    %v2115 = vld [vmem:[#allocation11 + $0x2d0] sm:$0xff]
    %v2116 = vld [vmem:[#allocation11 + $0x2d8] sm:$0xff]
    %v2117 = vld [vmem:[#allocation11 + $0x2e0] sm:$0xff]
    %v2118 = vld [vmem:[#allocation11 + $0x2e8] sm:$0xff]
    %v2119 = vld [vmem:[#allocation11 + $0x2f0] sm:$0xff]
    %v2120 = vld [vmem:[#allocation11 + $0x2f8] sm:$0xff]
    %v2121 = vld [vmem:[#allocation11 + $0x300] sm:$0xff]
    %v2122 = vld [vmem:[#allocation11 + $0x308] sm:$0xff]
    %v2123 = vld [vmem:[#allocation11 + $0x310] sm:$0xff]
    %v2124 = vld [vmem:[#allocation11 + $0x318] sm:$0xff]
    %v2125 = vld [vmem:[#allocation11 + $0x320] sm:$0xff]
    %v2126 = vld [vmem:[#allocation11 + $0x328] sm:$0xff]
    %v2127 = vld [vmem:[#allocation11 + $0x330] sm:$0xff]
    %v2128 = vld [vmem:[#allocation11 + $0x338] sm:$0xff]
    %v2129 = vld [vmem:[#allocation11 + $0x340] sm:$0xff]
    %v2130 = vld [vmem:[#allocation11 + $0x348] sm:$0xff]
    %v2131 = vld [vmem:[#allocation11 + $0x350] sm:$0xff]
    %v2132 = vld [vmem:[#allocation11 + $0x358] sm:$0xff]
    %v2133 = vld [vmem:[#allocation11 + $0x360] sm:$0xff]
    %v2134 = vld [vmem:[#allocation11 + $0x368] sm:$0xff]
    %v2135 = vld [vmem:[#allocation11 + $0x370] sm:$0xff]
    %v2136 = vld [vmem:[#allocation11 + $0x378] sm:$0xff]
    %v2137 = vld [vmem:[#allocation11 + $0x380] sm:$0xff]
    %v2138 = vld [vmem:[#allocation11 + $0x388] sm:$0xff]
    %v2139 = vld [vmem:[#allocation11 + $0x390] sm:$0xff]
    %v2140 = vld [vmem:[#allocation11 + $0x398] sm:$0xff]
    %v2141 = vld [vmem:[#allocation11 + $0x3a0] sm:$0xff]
    %v2142 = vld [vmem:[#allocation11 + $0x3a8] sm:$0xff]
    %v2143 = vld [vmem:[#allocation11 + $0x3b0] sm:$0xff]
    %v2144 = vld [vmem:[#allocation11 + $0x3b8] sm:$0xff]
    %v2145 = vld [vmem:[#allocation11 + $0x3c0] sm:$0xff]
    %v2146 = vld [vmem:[#allocation11 + $0x3c8] sm:$0xff]
    %v2147 = vld [vmem:[#allocation11 + $0x3d0] sm:$0xff]
    %v2148 = vld [vmem:[#allocation11 + $0x3d8] sm:$0xff]
    %v2149 = vld [vmem:[#allocation11 + $0x3e0] sm:$0xff]
    %v2150 = vld [vmem:[#allocation11 + $0x3e8] sm:$0xff]
    %v2151 = vld [vmem:[#allocation11 + $0x3f0] sm:$0xff]
    %v2152 = vld [vmem:[#allocation11 + $0x3f8] sm:$0xff]
    %v2153 = vld [vmem:[#allocation13] sm:$0x1]
    %2154 = vmatpush.msra.mxu0 %v2040
    %2155 = vmatpush.msra.mxu0 %v2039
    %2156 = vmatpush.msra.mxu0 %v2038
    %2157 = vmatpush.msra.mxu0 %v2037
    %2158 = vmatpush.msra.mxu0 %v2036
    %2159 = vmatpush.msra.mxu0 %v2035
    %2160 = vmatpush.msra.mxu0 %v2034
    %2161 = vmatpush.msra.mxu0 %v2033
    %2162 = vmatpush.msra.mxu0 %v2032
    %2163 = vmatpush.msra.mxu0 %v2031
    %2164 = vmatpush.msra.mxu0 %v2030
    %2165 = vmatpush.msra.mxu0 %v2029
    %2166 = vmatpush.msra.mxu0 %v2028
    %2167 = vmatpush.msra.mxu0 %v2027
    %2168 = vmatpush.msra.mxu0 %v2026
    %2169 = vmatpush.msra.mxu0 %v2025
    %2170 = vmatmul.f32.gmra.mxu0 %v2017
    %v2171 = vpop.f32.mrf.mxu0
    %v2172 = vadd.f32 %v2153, %v2171
    %2173 = vdwg.mxu0
    %2174 = vmatpush.msra.mxu0 %v2056
    %2175 = vmatpush.msra.mxu0 %v2055
    %2176 = vmatpush.msra.mxu0 %v2054
    %2177 = vmatpush.msra.mxu0 %v2053
    %2178 = vmatpush.msra.mxu0 %v2052
    %2179 = vmatpush.msra.mxu0 %v2051
    %2180 = vmatpush.msra.mxu0 %v2050
    %2181 = vmatpush.msra.mxu0 %v2049
    %2182 = vmatpush.msra.mxu0 %v2048
    %2183 = vmatpush.msra.mxu0 %v2047
    %2184 = vmatpush.msra.mxu0 %v2046
    %2185 = vmatpush.msra.mxu0 %v2045
    %2186 = vmatpush.msra.mxu0 %v2044
    %2187 = vmatpush.msra.mxu0 %v2043
    %2188 = vmatpush.msra.mxu0 %v2042
    %2189 = vmatpush.msra.mxu0 %v2041
    %2190 = vmatmul.f32.gmra.mxu0 %v2018
    %v2191 = vpop.f32.mrf.mxu0
    %v2192 = vadd.f32 %v2172, %v2191
    %2193 = vdwg.mxu0
    %2194 = vmatpush.msra.mxu0 %v2072
    %2195 = vmatpush.msra.mxu0 %v2071
    %2196 = vmatpush.msra.mxu0 %v2070
    %2197 = vmatpush.msra.mxu0 %v2069
    %2198 = vmatpush.msra.mxu0 %v2068
    %2199 = vmatpush.msra.mxu0 %v2067
    %2200 = vmatpush.msra.mxu0 %v2066
    %2201 = vmatpush.msra.mxu0 %v2065
    %2202 = vmatpush.msra.mxu0 %v2064
    %2203 = vmatpush.msra.mxu0 %v2063
    %2204 = vmatpush.msra.mxu0 %v2062
    %2205 = vmatpush.msra.mxu0 %v2061
    %2206 = vmatpush.msra.mxu0 %v2060
    %2207 = vmatpush.msra.mxu0 %v2059
    %2208 = vmatpush.msra.mxu0 %v2058
    %2209 = vmatpush.msra.mxu0 %v2057
    %2210 = vmatmul.f32.gmra.mxu0 %v2019
    %v2211 = vpop.f32.mrf.mxu0
    %v2212 = vadd.f32 %v2192, %v2211
    %2213 = vdwg.mxu0
    %2214 = vmatpush.msra.mxu0 %v2088
    %2215 = vmatpush.msra.mxu0 %v2087
    %2216 = vmatpush.msra.mxu0 %v2086
    %2217 = vmatpush.msra.mxu0 %v2085
    %2218 = vmatpush.msra.mxu0 %v2084
    %2219 = vmatpush.msra.mxu0 %v2083
    %2220 = vmatpush.msra.mxu0 %v2082
    %2221 = vmatpush.msra.mxu0 %v2081
    %2222 = vmatpush.msra.mxu0 %v2080
    %2223 = vmatpush.msra.mxu0 %v2079
    %2224 = vmatpush.msra.mxu0 %v2078
    %2225 = vmatpush.msra.mxu0 %v2077
    %2226 = vmatpush.msra.mxu0 %v2076
    %2227 = vmatpush.msra.mxu0 %v2075
    %2228 = vmatpush.msra.mxu0 %v2074
    %2229 = vmatpush.msra.mxu0 %v2073
    %2230 = vmatmul.f32.gmra.mxu0 %v2020
    %v2231 = vpop.f32.mrf.mxu0
    %v2232 = vadd.f32 %v2212, %v2231
    %2233 = vdwg.mxu0
    %2234 = vmatpush.msra.mxu0 %v2104
    %2235 = vmatpush.msra.mxu0 %v2103
    %2236 = vmatpush.msra.mxu0 %v2102
    %2237 = vmatpush.msra.mxu0 %v2101
    %2238 = vmatpush.msra.mxu0 %v2100
    %2239 = vmatpush.msra.mxu0 %v2099
    %2240 = vmatpush.msra.mxu0 %v2098
    %2241 = vmatpush.msra.mxu0 %v2097
    %2242 = vmatpush.msra.mxu0 %v2096
    %2243 = vmatpush.msra.mxu0 %v2095
    %2244 = vmatpush.msra.mxu0 %v2094
    %2245 = vmatpush.msra.mxu0 %v2093
    %2246 = vmatpush.msra.mxu0 %v2092
    %2247 = vmatpush.msra.mxu0 %v2091
    %2248 = vmatpush.msra.mxu0 %v2090
    %2249 = vmatpush.msra.mxu0 %v2089
    %2250 = vmatmul.f32.gmra.mxu0 %v2021
    %v2251 = vpop.f32.mrf.mxu0
    %v2252 = vadd.f32 %v2232, %v2251
    %2253 = vdwg.mxu0
    %2254 = vmatpush.msra.mxu0 %v2120
    %2255 = vmatpush.msra.mxu0 %v2119
    %2256 = vmatpush.msra.mxu0 %v2118
    %2257 = vmatpush.msra.mxu0 %v2117
    %2258 = vmatpush.msra.mxu0 %v2116
    %2259 = vmatpush.msra.mxu0 %v2115
    %2260 = vmatpush.msra.mxu0 %v2114
    %2261 = vmatpush.msra.mxu0 %v2113
    %2262 = vmatpush.msra.mxu0 %v2112
    %2263 = vmatpush.msra.mxu0 %v2111
    %2264 = vmatpush.msra.mxu0 %v2110
    %2265 = vmatpush.msra.mxu0 %v2109
    %2266 = vmatpush.msra.mxu0 %v2108
    %2267 = vmatpush.msra.mxu0 %v2107
    %2268 = vmatpush.msra.mxu0 %v2106
    %2269 = vmatpush.msra.mxu0 %v2105
    %2270 = vmatmul.f32.gmra.mxu0 %v2022
    %v2271 = vpop.f32.mrf.mxu0
    %v2272 = vadd.f32 %v2252, %v2271
    %2273 = vdwg.mxu0
    %2274 = vmatpush.msra.mxu0 %v2136
    %2275 = vmatpush.msra.mxu0 %v2135
    %2276 = vmatpush.msra.mxu0 %v2134
    %2277 = vmatpush.msra.mxu0 %v2133
    %2278 = vmatpush.msra.mxu0 %v2132
    %2279 = vmatpush.msra.mxu0 %v2131
    %2280 = vmatpush.msra.mxu0 %v2130
    %2281 = vmatpush.msra.mxu0 %v2129
    %2282 = vmatpush.msra.mxu0 %v2128
    %2283 = vmatpush.msra.mxu0 %v2127
    %2284 = vmatpush.msra.mxu0 %v2126
    %2285 = vmatpush.msra.mxu0 %v2125
    %2286 = vmatpush.msra.mxu0 %v2124
    %2287 = vmatpush.msra.mxu0 %v2123
    %2288 = vmatpush.msra.mxu0 %v2122
    %2289 = vmatpush.msra.mxu0 %v2121
    %2290 = vmatmul.f32.gmra.mxu0 %v2023
    %v2291 = vpop.f32.mrf.mxu0
    %v2292 = vadd.f32 %v2272, %v2291
    %2293 = vdwg.mxu0
    %2294 = vmatpush.msra.mxu0 %v2152
    %2295 = vmatpush.msra.mxu0 %v2151
    %2296 = vmatpush.msra.mxu0 %v2150
    %2297 = vmatpush.msra.mxu0 %v2149
    %2298 = vmatpush.msra.mxu0 %v2148
    %2299 = vmatpush.msra.mxu0 %v2147
    %2300 = vmatpush.msra.mxu0 %v2146
    %2301 = vmatpush.msra.mxu0 %v2145
    %2302 = vmatpush.msra.mxu0 %v2144
    %2303 = vmatpush.msra.mxu0 %v2143
    %2304 = vmatpush.msra.mxu0 %v2142
    %2305 = vmatpush.msra.mxu0 %v2141
    %2306 = vmatpush.msra.mxu0 %v2140
    %2307 = vmatpush.msra.mxu0 %v2139
    %2308 = vmatpush.msra.mxu0 %v2138
    %2309 = vmatpush.msra.mxu0 %v2137
    %2310 = vmatmul.f32.gmra.mxu0 %v2024
    %v2311 = vpop.f32.mrf.mxu0
    %v2312 = vadd.f32 %v2292, %v2311
    %2313 = vdwg.mxu0
    %2314 = vst [vmem:[#allocation14] sm:$0x1] %v2312
    // Predicated region
    $region70: #{tpu_custom_call.1} parent=1 // pred_check
      _
    $region71: #{tpu_custom_call.1} parent=1 // pred_check_branch
      %2316 = sbr.rel (0) target = $region73
    $region72: #{tpu_custom_call.1} parent=1 // pred_region
      %2318 = vsyncadd [#allocation4], 0
      %s2320 = sshll.u32 [#allocation14], 4
      %s2321 = int_to_ptr.vmem [resolvable:$true] %s2320
      %s2322 = sshll.u32 %s10, 4
      %s2323 = int_to_ptr.hbm [resolvable:$true] %s2322
      %2325 = dma.vmem_to_hbm [thread:$0]  %s2321, 16, %s2323, [#allocation4]
    $region73: #{tpu_custom_call.1} parent=1 // pred_fallthru
      _
    // Predicated region
    $region74: #{tpu_custom_call.1} parent=1 // pred_check
      _
    $region75: #{tpu_custom_call.1} parent=1 // pred_check_branch
      %2327 = sbr.rel (0) target = $region77
    $region76: #{tpu_custom_call.1} parent=1 // pred_region
      %2329 = dma.done [#allocation4], 16
    $region77: #{tpu_custom_call.1} parent=1 // pred_fallthru
      _
    %2330 = vsyncpa [#allocation3], 1
    %2331 = vsyncpa [#allocation6], 1
    %2332 = vsyncpa [#allocation9], 1
    %2333 = vsyncpa [#allocation12], 1
    %2334 = vsyncpa [#allocation4], 1

</llo_original>
